<compile_context>
chip_gen: v7x
topology: tpu7x:2x2x1
jax: 0.10.0
libtpu: 0.0.40
codegen_flags: <defaults>
</compile_context>

<pallas_src>
import functools

import jax
import jax.numpy as jnp
from jax import lax
from jax.experimental import pallas as pl
from jax.experimental.pallas import tpu as pltpu

LABEL_NUM = 3
IN_DIM = 10
HIDDEN = 256
BN_EPS = 1e-5
K_PAD = 16          # feature dim zero-padded to a sublane-friendly size


def _round_up(n, m):
    return ((n + m - 1) // m) * m


# --------------------------------------------------------------------------
# Pass 1: hidden-activation statistics (sum and sum-of-squares per feature)
# --------------------------------------------------------------------------
def _stats_kernel(x_ref, w1_ref, b1_ref, s1_ref, s2_ref, *, tile_b, true_b, masked):
    t = pl.program_id(0)

    # h^T = relu(W1 @ x^T + b1) : (HIDDEN, tile_b), f32 accumulation on the MXU
    h = jnp.dot(w1_ref[...], x_ref[...], preferred_element_type=jnp.float32)
    h = jnp.maximum(h + b1_ref[...], 0.0)

    if masked:  # zero out padded batch columns so they don't pollute the stats
        col = t * tile_b + lax.broadcasted_iota(jnp.int32, h.shape, 1)
        h = jnp.where(col < true_b, h, 0.0)

    part_sum = jnp.sum(h, axis=1, keepdims=True)        # (HIDDEN, 1)
    part_sq = jnp.sum(h * h, axis=1, keepdims=True)     # (HIDDEN, 1)

    @pl.when(t == 0)
    def _():
        s1_ref[...] = jnp.zeros_like(s1_ref)
        s2_ref[...] = jnp.zeros_like(s2_ref)

    s1_ref[...] += part_sum
    s2_ref[...] += part_sq


# --------------------------------------------------------------------------
# Pass 2: BN affine (pre-folded) + Linear(256,3) + softmax
# --------------------------------------------------------------------------
def _apply_kernel(x_ref, w1_ref, b1_ref, scale_ref, shift_ref, w2_ref, b2_ref,
                  o_ref):
    h = jnp.dot(w1_ref[...], x_ref[...], preferred_element_type=jnp.float32)
    h = jnp.maximum(h + b1_ref[...], 0.0)

    # BatchNorm folded into a per-feature affine (computed in the wrapper).
    h = h * scale_ref[...] + shift_ref[...]

    logits = jnp.dot(w2_ref[...], h.astype(w2_ref.dtype),
                     preferred_element_type=jnp.float32)
    logits = logits + b2_ref[...]                        # (LABEL_NUM, tile_b)

    # softmax over the (sublane) label axis; batch stays lane-dense.
    m = jnp.max(logits, axis=0, keepdims=True)
    e = jnp.exp(logits - m)
    denom = jnp.sum(e, axis=0, keepdims=True)
    o_ref[...] = (e * pl.reciprocal(denom)).astype(o_ref.dtype)


# --------------------------------------------------------------------------
# Host wrapper
# --------------------------------------------------------------------------
@functools.partial(jax.jit, static_argnames=("compute_dtype", "max_tile_b"))
def mlp_forward(x, params, *, compute_dtype=jnp.float32, max_tile_b=1024):
    """x: (B, 10) float32.  params: PyTorch-layout weights (see init_params)."""
    B = x.shape[0]

    tile_b = min(max_tile_b, _round_up(max(B, 1), 128))
    b_pad = _round_up(B, tile_b)
    num_tiles = b_pad // tile_b

    # Feature-major, zero-padded input: (K_PAD, b_pad); batch on the lane axis.
    x_pad = jnp.zeros((b_pad, K_PAD), jnp.float32).at[:B, :IN_DIM].set(x)
    xT = x_pad.T.astype(compute_dtype)

    # Weights: PyTorch layout (out, in) is already the transposed-form layout.
    w1 = (jnp.zeros((HIDDEN, K_PAD), jnp.float32)
          .at[:, :IN_DIM].set(params["w1"]).astype(compute_dtype))
    w2 = params["w2"].astype(compute_dtype)
    b1 = params["b1"].reshape(HIDDEN, 1).astype(jnp.float32)
    b2 = params["b2"].reshape(LABEL_NUM, 1).astype(jnp.float32)
    gamma = params["gamma"].reshape(HIDDEN, 1).astype(jnp.float32)
    beta = params["beta"].reshape(HIDDEN, 1).astype(jnp.float32)

    const_spec = lambda shape: pl.BlockSpec(shape, lambda t: (0, 0))

    # ---- pass 1: full-batch statistics (accumulated across tiles) ----------
    s1, s2 = pl.pallas_call(
        functools.partial(_stats_kernel, tile_b=tile_b, true_b=B,
                          masked=(b_pad != B)),
        out_shape=(jax.ShapeDtypeStruct((HIDDEN, 1), jnp.float32),
                   jax.ShapeDtypeStruct((HIDDEN, 1), jnp.float32)),
        grid=(num_tiles,),
        in_specs=[
            pl.BlockSpec((K_PAD, tile_b), lambda t: (0, t)),   # x^T tile
            const_spec((HIDDEN, K_PAD)),                       # W1 (resident)
            const_spec((HIDDEN, 1)),                           # b1 (resident)
        ],
        out_specs=(const_spec((HIDDEN, 1)), const_spec((HIDDEN, 1))),
        compiler_params=pltpu.CompilerParams(
            dimension_semantics=("arbitrary",)),
    )(xT, w1, b1)

    # BN statistics -> folded affine (tiny 256-element math, plain XLA).
    count = jnp.float32(B)
    mean = s1 / count
    var = jnp.maximum(s2 / count - mean * mean, 0.0)     # biased variance
    scale = gamma / jnp.sqrt(var + BN_EPS)
    shift = beta - mean * scale

    # ---- pass 2: normalize + Linear(256,3) + softmax (batch-parallel) ------
    outT = pl.pallas_call(
        _apply_kernel,
        out_shape=jax.ShapeDtypeStruct((LABEL_NUM, b_pad), jnp.float32),
        grid=(num_tiles,),
        in_specs=[
            pl.BlockSpec((K_PAD, tile_b), lambda t: (0, t)),   # x^T tile
            const_spec((HIDDEN, K_PAD)),                       # W1
            const_spec((HIDDEN, 1)),                           # b1
            const_spec((HIDDEN, 1)),                           # BN scale
            const_spec((HIDDEN, 1)),                           # BN shift
            const_spec((LABEL_NUM, HIDDEN)),                   # W2
            const_spec((LABEL_NUM, 1)),                        # b2
        ],
        out_specs=pl.BlockSpec((LABEL_NUM, tile_b), lambda t: (0, t)),
        compiler_params=pltpu.CompilerParams(
            dimension_semantics=("parallel",)),
    )(xT, w1, b1, scale, shift, w2, b2)

    # (3, b_pad) lane-dense kernel output -> (B, 3) user layout.
    return outT[:, :B].T


# --------------------------------------------------------------------------
# Params (PyTorch layout: weight is (out_features, in_features)) & reference
# --------------------------------------------------------------------------
def init_params(key):
    k1, k2, k3, k4 = jax.random.split(key, 4)
    bound1 = 1.0 / (IN_DIM ** 0.5)
    bound2 = 1.0 / (HIDDEN ** 0.5)
    return {
        "w1": jax.random.uniform(k1, (HIDDEN, IN_DIM), jnp.float32, -bound1, bound1),
        "b1": jax.random.uniform(k2, (HIDDEN,), jnp.float32, -bound1, bound1),
        "gamma": jnp.ones((HIDDEN,), jnp.float32),   # BatchNorm1d weight init
        "beta": jnp.zeros((HIDDEN,), jnp.float32),   # BatchNorm1d bias init
        "w2": jax.random.uniform(k3, (LABEL_NUM, HIDDEN), jnp.float32, -bound2, bound2),
        "b2": jax.random.uniform(k4, (LABEL_NUM,), jnp.float32, -bound2, bound2),
    }


def mlp_reference(x, params):
    """Pure-JAX reference (PyTorch semantics: y = x @ W.T + b, training-mode BN)."""
    h = x @ params["w1"].T + params["b1"]
    h = jnp.maximum(h, 0.0)
    mean = jnp.mean(h, axis=0, keepdims=True)
    var = jnp.mean((h - mean) ** 2, axis=0, keepdims=True)   # biased
    h = (h - mean) / jnp.sqrt(var + BN_EPS) * params["gamma"] + params["beta"]
    logits = h @ params["w2"].T + params["b2"]
    return jax.nn.softmax(logits, axis=-1)


if __name__ == "__main__":
    key = jax.random.PRNGKey(0)
    pkey, xkey = jax.random.split(key)
    params = init_params(pkey)

    B = 8
    x = jax.random.normal(xkey, (B, IN_DIM), jnp.float32)

    ref = mlp_reference(x, params)

    # f32 operands: strict correctness check.
    out = jax.block_until_ready(mlp_forward(x, params, compute_dtype=jnp.float32))
    assert out.shape == (B, LABEL_NUM)
    assert jnp.allclose(out, ref, atol=1e-5, rtol=1e-5), "f32 mismatch vs reference"
    assert jnp.allclose(jnp.sum(out, axis=-1), 1.0, atol=1e-5), "softmax rows must sum to 1"

    # bf16 MXU operands (production setting on v6e/v7x): looser tolerance.
    out_bf16 = jax.block_until_ready(mlp_forward(x, params, compute_dtype=jnp.bfloat16))
    assert out_bf16.shape == (B, LABEL_NUM)
    assert jnp.allclose(out_bf16, ref, atol=5e-2), "bf16 path mismatch vs reference"
    assert jnp.allclose(jnp.sum(out_bf16, axis=-1), 1.0, atol=1e-3)

    print("KERNEL_OK")
</pallas_src>

<mosaic_0001>
module attributes {stable_mosaic.version = 11 : i64} {
  func.func @_stats_kernel(%arg0: i32, %arg1: memref<16x128xf32, #tpu.memory_space<vmem>>, %arg2: memref<256x16xf32, #tpu.memory_space<vmem>>, %arg3: memref<256x1xf32, #tpu.memory_space<vmem>>, %arg4: memref<256x1xf32, #tpu.memory_space<vmem>>, %arg5: memref<256x1xf32, #tpu.memory_space<vmem>>) attributes {dimension_semantics = [#tpu.dimension_semantics<arbitrary>], iteration_bounds = array<i64: 1>, scalar_prefetch = 0 : i64, scratch_operands = 0 : i64, tpu.core_type = #tpu.core_type<tc>, window_params = [{transform_indices = @transform_0, window_bounds = array<i64: 16, 128>}, {pipeline_mode = #tpu.pipeline_mode<synchronous>, transform_indices = @transform_1, window_bounds = array<i64: 256, 16>}, {pipeline_mode = #tpu.pipeline_mode<synchronous>, transform_indices = @transform_2, window_bounds = array<i64: 256, 1>}, {pipeline_mode = #tpu.pipeline_mode<synchronous>, transform_indices = @transform_3, window_bounds = array<i64: 256, 1>}, {pipeline_mode = #tpu.pipeline_mode<synchronous>, transform_indices = @transform_4, window_bounds = array<i64: 256, 1>}]} {
    %c0 = arith.constant 0 : index
    %c0_0 = arith.constant 0 : index
    %0 = vector.load %arg2[%c0, %c0_0] : memref<256x16xf32, #tpu.memory_space<vmem>>, vector<256x16xf32>
    %c0_1 = arith.constant 0 : index
    %c0_2 = arith.constant 0 : index
    %1 = vector.load %arg1[%c0_1, %c0_2] : memref<16x128xf32, #tpu.memory_space<vmem>>, vector<16x128xf32>
    %cst = arith.constant dense<0.000000e+00> : vector<256x128xf32>
    %2 = tpu.matmul %0, %1, %cst {dimension_numbers = #tpu.dot_dimension_numbers<[1], [0], [0], [1], [0, 0, 1, 1], [], []>} : vector<256x16xf32>, vector<16x128xf32>, vector<256x128xf32> -> vector<256x128xf32>
    %c0_3 = arith.constant 0 : index
    %c0_4 = arith.constant 0 : index
    %3 = vector.load %arg3[%c0_3, %c0_4] : memref<256x1xf32, #tpu.memory_space<vmem>>, vector<256x1xf32>
    %4 = vector.broadcast %3 : vector<256x1xf32> to vector<256x128xf32>
    %5 = arith.addf %2, %4 : vector<256x128xf32>
    %cst_5 = arith.constant 0.000000e+00 : f32
    %6 = vector.broadcast %cst_5 : f32 to vector<256x128xf32>
    %7 = arith.maximumf %5, %6 : vector<256x128xf32>
    %c128_i32 = arith.constant 128 : i32
    %8 = arith.muli %arg0, %c128_i32 : i32
    %9 = tpu.iota {dimensions = array<i32: 1>} : vector<256x128xi32>
    %10 = vector.broadcast %8 : i32 to vector<256x128xi32>
    %11 = arith.addi %10, %9 : vector<256x128xi32>
    %c8_i32 = arith.constant 8 : i32
    %12 = vector.broadcast %c8_i32 : i32 to vector<256x128xi32>
    %13 = arith.cmpi slt, %11, %12 : vector<256x128xi32>
    %cst_6 = arith.constant 0.000000e+00 : f32
    %14 = vector.broadcast %cst_6 : f32 to vector<256x128xf32>
    %15 = arith.select %13, %7, %14 : vector<256x128xi1>, vector<256x128xf32>
    %cst_7 = arith.constant dense<0.000000e+00> : vector<256xf32>
    %16 = vector.multi_reduction <add>, %15, %cst_7 [1] : vector<256x128xf32> to vector<256xf32>
    %17 = vector.shape_cast %16 : vector<256xf32> to vector<256x1xf32>
    %18 = arith.mulf %15, %15 : vector<256x128xf32>
    %cst_8 = arith.constant dense<0.000000e+00> : vector<256xf32>
    %19 = vector.multi_reduction <add>, %18, %cst_8 [1] : vector<256x128xf32> to vector<256xf32>
    %20 = vector.shape_cast %19 : vector<256xf32> to vector<256x1xf32>
    %c0_i32 = arith.constant 0 : i32
    %21 = arith.cmpi eq, %arg0, %c0_i32 : i32
    %22 = arith.extui %21 : i1 to i32
    %c0_i32_9 = arith.constant 0 : i32
    %23 = arith.cmpi ne, %22, %c0_i32_9 : i32
    scf.if %23 {
      %cst_18 = arith.constant 0.000000e+00 : f32
      %30 = vector.broadcast %cst_18 : f32 to vector<256x1xf32>
      %c0_19 = arith.constant 0 : index
      %c0_20 = arith.constant 0 : index
      %31 = vector.load %arg4[%c0_19, %c0_20] : memref<256x1xf32, #tpu.memory_space<vmem>>, vector<256x1xf32>
      tpu.vector_store %arg4[%c0_19, %c0_20], %30 {strides = array<i32>} : memref<256x1xf32, #tpu.memory_space<vmem>>, vector<256x1xf32>,
      %cst_21 = arith.constant 0.000000e+00 : f32
      %32 = vector.broadcast %cst_21 : f32 to vector<256x1xf32>
      %c0_22 = arith.constant 0 : index
      %c0_23 = arith.constant 0 : index
      %33 = vector.load %arg5[%c0_22, %c0_23] : memref<256x1xf32, #tpu.memory_space<vmem>>, vector<256x1xf32>
      tpu.vector_store %arg5[%c0_22, %c0_23], %32 {strides = array<i32>} : memref<256x1xf32, #tpu.memory_space<vmem>>, vector<256x1xf32>,
    } else {
    }
    %c0_10 = arith.constant 0 : index
    %c0_11 = arith.constant 0 : index
    %24 = vector.load %arg4[%c0_10, %c0_11] : memref<256x1xf32, #tpu.memory_space<vmem>>, vector<256x1xf32>
    %25 = arith.addf %24, %17 : vector<256x1xf32>
    %c0_12 = arith.constant 0 : index
    %c0_13 = arith.constant 0 : index
    %26 = vector.load %arg4[%c0_12, %c0_13] : memref<256x1xf32, #tpu.memory_space<vmem>>, vector<256x1xf32>
    tpu.vector_store %arg4[%c0_12, %c0_13], %25 {strides = array<i32>} : memref<256x1xf32, #tpu.memory_space<vmem>>, vector<256x1xf32>,
    %c0_14 = arith.constant 0 : index
    %c0_15 = arith.constant 0 : index
    %27 = vector.load %arg5[%c0_14, %c0_15] : memref<256x1xf32, #tpu.memory_space<vmem>>, vector<256x1xf32>
    %28 = arith.addf %27, %20 : vector<256x1xf32>
    %c0_16 = arith.constant 0 : index
    %c0_17 = arith.constant 0 : index
    %29 = vector.load %arg5[%c0_16, %c0_17] : memref<256x1xf32, #tpu.memory_space<vmem>>, vector<256x1xf32>
    tpu.vector_store %arg5[%c0_16, %c0_17], %28 {strides = array<i32>} : memref<256x1xf32, #tpu.memory_space<vmem>>, vector<256x1xf32>,
    return
  }
  func.func @transform_0(%arg0: i32) -> (i32, i32) {
    %c0_i32 = arith.constant 0 : i32
    %c0_i32_0 = arith.constant 0 : i32
    return %c0_i32, %arg0 : i32, i32
  }
  func.func @transform_1(%arg0: i32) -> (i32, i32) {
    %c0_i32 = arith.constant 0 : i32
    %c0_i32_0 = arith.constant 0 : i32
    %c0_i32_1 = arith.constant 0 : i32
    return %c0_i32, %c0_i32_0 : i32, i32
  }
  func.func @transform_2(%arg0: i32) -> (i32, i32) {
    %c0_i32 = arith.constant 0 : i32
    %c0_i32_0 = arith.constant 0 : i32
    %c0_i32_1 = arith.constant 0 : i32
    return %c0_i32, %c0_i32_0 : i32, i32
  }
  func.func @transform_3(%arg0: i32) -> (i32, i32) {
    %c0_i32 = arith.constant 0 : i32
    %c0_i32_0 = arith.constant 0 : i32
    %c0_i32_1 = arith.constant 0 : i32
    return %c0_i32, %c0_i32_0 : i32, i32
  }
  func.func @transform_4(%arg0: i32) -> (i32, i32) {
    %c0_i32 = arith.constant 0 : i32
    %c0_i32_0 = arith.constant 0 : i32
    %c0_i32_1 = arith.constant 0 : i32
    return %c0_i32, %c0_i32_0 : i32, i32
  }
}

module attributes {stable_mosaic.version = 11 : i64} {
  func.func @_apply_kernel(%arg0: i32, %arg1: memref<16x128xf32, #tpu.memory_space<vmem>>, %arg2: memref<256x16xf32, #tpu.memory_space<vmem>>, %arg3: memref<256x1xf32, #tpu.memory_space<vmem>>, %arg4: memref<256x1xf32, #tpu.memory_space<vmem>>, %arg5: memref<256x1xf32, #tpu.memory_space<vmem>>, %arg6: memref<3x256xf32, #tpu.memory_space<vmem>>, %arg7: memref<3x1xf32, #tpu.memory_space<vmem>>, %arg8: memref<3x128xf32, #tpu.memory_space<vmem>>) attributes {dimension_semantics = [#tpu.dimension_semantics<parallel>], iteration_bounds = array<i64: 1>, scalar_prefetch = 0 : i64, scratch_operands = 0 : i64, tpu.core_type = #tpu.core_type<tc>, window_params = [{transform_indices = @transform_0, window_bounds = array<i64: 16, 128>}, {pipeline_mode = #tpu.pipeline_mode<synchronous>, transform_indices = @transform_1, window_bounds = array<i64: 256, 16>}, {pipeline_mode = #tpu.pipeline_mode<synchronous>, transform_indices = @transform_2, window_bounds = array<i64: 256, 1>}, {pipeline_mode = #tpu.pipeline_mode<synchronous>, transform_indices = @transform_3, window_bounds = array<i64: 256, 1>}, {pipeline_mode = #tpu.pipeline_mode<synchronous>, transform_indices = @transform_4, window_bounds = array<i64: 256, 1>}, {pipeline_mode = #tpu.pipeline_mode<synchronous>, transform_indices = @transform_5, window_bounds = array<i64: 3, 256>}, {pipeline_mode = #tpu.pipeline_mode<synchronous>, transform_indices = @transform_6, window_bounds = array<i64: 3, 1>}, {transform_indices = @transform_7, window_bounds = array<i64: 3, 128>}]} {
    %c0 = arith.constant 0 : index
    %c0_0 = arith.constant 0 : index
    %0 = vector.load %arg2[%c0, %c0_0] : memref<256x16xf32, #tpu.memory_space<vmem>>, vector<256x16xf32>
    %c0_1 = arith.constant 0 : index
    %c0_2 = arith.constant 0 : index
    %1 = vector.load %arg1[%c0_1, %c0_2] : memref<16x128xf32, #tpu.memory_space<vmem>>, vector<16x128xf32>
    %cst = arith.constant dense<0.000000e+00> : vector<256x128xf32>
    %2 = tpu.matmul %0, %1, %cst {dimension_numbers = #tpu.dot_dimension_numbers<[1], [0], [0], [1], [0, 0, 1, 1], [], []>} : vector<256x16xf32>, vector<16x128xf32>, vector<256x128xf32> -> vector<256x128xf32>
    %c0_3 = arith.constant 0 : index
    %c0_4 = arith.constant 0 : index
    %3 = vector.load %arg3[%c0_3, %c0_4] : memref<256x1xf32, #tpu.memory_space<vmem>>, vector<256x1xf32>
    %4 = vector.broadcast %3 : vector<256x1xf32> to vector<256x128xf32>
    %5 = arith.addf %2, %4 : vector<256x128xf32>
    %cst_5 = arith.constant 0.000000e+00 : f32
    %6 = vector.broadcast %cst_5 : f32 to vector<256x128xf32>
    %7 = arith.maximumf %5, %6 : vector<256x128xf32>
    %c0_6 = arith.constant 0 : index
    %c0_7 = arith.constant 0 : index
    %8 = vector.load %arg4[%c0_6, %c0_7] : memref<256x1xf32, #tpu.memory_space<vmem>>, vector<256x1xf32>
    %9 = vector.broadcast %8 : vector<256x1xf32> to vector<256x128xf32>
    %10 = arith.mulf %7, %9 : vector<256x128xf32>
    %c0_8 = arith.constant 0 : index
    %c0_9 = arith.constant 0 : index
    %11 = vector.load %arg5[%c0_8, %c0_9] : memref<256x1xf32, #tpu.memory_space<vmem>>, vector<256x1xf32>
    %12 = vector.broadcast %11 : vector<256x1xf32> to vector<256x128xf32>
    %13 = arith.addf %10, %12 : vector<256x128xf32>
    %c0_10 = arith.constant 0 : index
    %c0_11 = arith.constant 0 : index
    %14 = vector.load %arg6[%c0_10, %c0_11] : memref<3x256xf32, #tpu.memory_space<vmem>>, vector<3x256xf32>
    %cst_12 = arith.constant dense<0.000000e+00> : vector<3x128xf32>
    %15 = tpu.matmul %14, %13, %cst_12 {dimension_numbers = #tpu.dot_dimension_numbers<[1], [0], [0], [1], [0, 0, 1, 1], [], []>} : vector<3x256xf32>, vector<256x128xf32>, vector<3x128xf32> -> vector<3x128xf32>
    %c0_13 = arith.constant 0 : index
    %c0_14 = arith.constant 0 : index
    %16 = vector.load %arg7[%c0_13, %c0_14] : memref<3x1xf32, #tpu.memory_space<vmem>>, vector<3x1xf32>
    %17 = vector.broadcast %16 : vector<3x1xf32> to vector<3x128xf32>
    %18 = arith.addf %15, %17 : vector<3x128xf32>
    %cst_15 = arith.constant dense<0xFF800000> : vector<128xf32>
    %19 = vector.multi_reduction <maximumf>, %18, %cst_15 [0] : vector<3x128xf32> to vector<128xf32>
    %20 = vector.shape_cast %19 : vector<128xf32> to vector<1x128xf32>
    %21 = vector.broadcast %20 : vector<1x128xf32> to vector<3x128xf32>
    %22 = arith.subf %18, %21 : vector<3x128xf32>
    %23 = math.exp %22 : vector<3x128xf32>
    %cst_16 = arith.constant dense<0.000000e+00> : vector<128xf32>
    %24 = vector.multi_reduction <add>, %23, %cst_16 [0] : vector<3x128xf32> to vector<128xf32>
    %25 = vector.shape_cast %24 : vector<128xf32> to vector<1x128xf32>
    %26 = tpu.reciprocal %25 : vector<1x128xf32> -> vector<1x128xf32>
    %27 = vector.broadcast %26 : vector<1x128xf32> to vector<3x128xf32>
    %28 = arith.mulf %23, %27 : vector<3x128xf32>
    %c0_17 = arith.constant 0 : index
    %c0_18 = arith.constant 0 : index
    %29 = vector.load %arg8[%c0_17, %c0_18] : memref<3x128xf32, #tpu.memory_space<vmem>>, vector<3x128xf32>
    tpu.vector_store %arg8[%c0_17, %c0_18], %28 {strides = array<i32>} : memref<3x128xf32, #tpu.memory_space<vmem>>, vector<3x128xf32>,
    return
  }
  func.func @transform_0(%arg0: i32) -> (i32, i32) {
    %c0_i32 = arith.constant 0 : i32
    %c0_i32_0 = arith.constant 0 : i32
    return %c0_i32, %arg0 : i32, i32
  }
  func.func @transform_1(%arg0: i32) -> (i32, i32) {
    %c0_i32 = arith.constant 0 : i32
    %c0_i32_0 = arith.constant 0 : i32
    %c0_i32_1 = arith.constant 0 : i32
    return %c0_i32, %c0_i32_0 : i32, i32
  }
  func.func @transform_2(%arg0: i32) -> (i32, i32) {
    %c0_i32 = arith.constant 0 : i32
    %c0_i32_0 = arith.constant 0 : i32
    %c0_i32_1 = arith.constant 0 : i32
    return %c0_i32, %c0_i32_0 : i32, i32
  }
  func.func @transform_3(%arg0: i32) -> (i32, i32) {
    %c0_i32 = arith.constant 0 : i32
    %c0_i32_0 = arith.constant 0 : i32
    %c0_i32_1 = arith.constant 0 : i32
    return %c0_i32, %c0_i32_0 : i32, i32
  }
  func.func @transform_4(%arg0: i32) -> (i32, i32) {
    %c0_i32 = arith.constant 0 : i32
    %c0_i32_0 = arith.constant 0 : i32
    %c0_i32_1 = arith.constant 0 : i32
    return %c0_i32, %c0_i32_0 : i32, i32
  }
  func.func @transform_5(%arg0: i32) -> (i32, i32) {
    %c0_i32 = arith.constant 0 : i32
    %c0_i32_0 = arith.constant 0 : i32
    %c0_i32_1 = arith.constant 0 : i32
    return %c0_i32, %c0_i32_0 : i32, i32
  }
  func.func @transform_6(%arg0: i32) -> (i32, i32) {
    %c0_i32 = arith.constant 0 : i32
    %c0_i32_0 = arith.constant 0 : i32
    %c0_i32_1 = arith.constant 0 : i32
    return %c0_i32, %c0_i32_0 : i32, i32
  }
  func.func @transform_7(%arg0: i32) -> (i32, i32) {
    %c0_i32 = arith.constant 0 : i32
    %c0_i32_0 = arith.constant 0 : i32
    return %c0_i32, %arg0 : i32, i32
  }
}

</mosaic_0001>

<llo_original>
// kernel: mlp_forward.3
$region0: #{mlp_forward.3}
  #allocation0 [shape = 'u32[]', space=smem, size = 0x4, offset = 0x4, fixed_abs, tag = 'smem constant byte address 0x4 - core index']
  #allocation1 [shape = 'u32[144,128]{1,0:T(1,128)}', space=vmem, size = 0x12000, scoped, tag = 'internal scratch']
  %s0 = inlined_call_operand.vmem [shape: f32[16,128], index: 0, kind: input, shape index: {}]
  %s1 = inlined_call_operand.vmem [shape: f32[256,16], index: 1, kind: input, shape index: {}]
  %s2 = inlined_call_operand.vmem [shape: f32[256,1], index: 2, kind: input, shape index: {}]
  %s3 = inlined_call_operand.vmem [shape: f32[256,1], index: 3, kind: input, shape index: {}]
  %s4 = inlined_call_operand.vmem [shape: f32[256,1], index: 4, kind: input, shape index: {}]
  %s5 = inlined_call_operand.vmem [shape: f32[3,256], index: 5, kind: input, shape index: {}]
  %s6 = inlined_call_operand.vmem [shape: f32[3,1], index: 6, kind: input, shape index: {}]
  %s7 = inlined_call_operand.vmem [shape: f32[3,128], index: 7, kind: output, shape index: {}]
  %s8 = sld [smem:[#allocation0]]
  $region38: #{mlp_forward.3} parent=0
    _
  %s10 = ssub.s32 1, %s8
  %s11 = scalar_select 0, %s10, %s8
  // Predicated region
  $region2: #{mlp_forward.3} parent=0 // pred_check
    _
  $region3: #{mlp_forward.3} parent=0 // pred_check_branch
    %13 = sbr.rel (0) target = $region5
  $region4: #{mlp_forward.3} parent=0 // pred_region
    _
  $region5: #{mlp_forward.3} parent=0 // pred_fallthru
    _
  // Predicated region
  $region6: #{mlp_forward.3} parent=0 // pred_check
    _
  $region7: #{mlp_forward.3} parent=0 // pred_check_branch
    %15 = sbr.rel (0) target = $region9
  $region8: #{mlp_forward.3} parent=0 // pred_region
    _
  $region9: #{mlp_forward.3} parent=0 // pred_fallthru
    _
  // Predicated region
  $region10: #{mlp_forward.3} parent=0 // pred_check
    _
  $region11: #{mlp_forward.3} parent=0 // pred_check_branch
    %17 = sbr.rel (0) target = $region13
  $region12: #{mlp_forward.3} parent=0 // pred_region
    _
  $region13: #{mlp_forward.3} parent=0 // pred_fallthru
    _
  // Predicated region
  $region14: #{mlp_forward.3} parent=0 // pred_check
    _
  $region15: #{mlp_forward.3} parent=0 // pred_check_branch
    %19 = sbr.rel (0) target = $region17
  $region16: #{mlp_forward.3} parent=0 // pred_region
    _
  $region17: #{mlp_forward.3} parent=0 // pred_fallthru
    _
  // Predicated region
  $region18: #{mlp_forward.3} parent=0 // pred_check
    _
  $region19: #{mlp_forward.3} parent=0 // pred_check_branch
    %21 = sbr.rel (0) target = $region21
  $region20: #{mlp_forward.3} parent=0 // pred_region
    _
  $region21: #{mlp_forward.3} parent=0 // pred_fallthru
    _
  // Predicated region
  $region22: #{mlp_forward.3} parent=0 // pred_check
    _
  $region23: #{mlp_forward.3} parent=0 // pred_check_branch
    %23 = sbr.rel (0) target = $region25
  $region24: #{mlp_forward.3} parent=0 // pred_region
    _
  $region25: #{mlp_forward.3} parent=0 // pred_fallthru
    _
  // Predicated region
  $region26: #{mlp_forward.3} parent=0 // pred_check
    _
  $region27: #{mlp_forward.3} parent=0 // pred_check_branch
    %25 = sbr.rel (0) target = $region29
  $region28: #{mlp_forward.3} parent=0 // pred_region
    _
  $region29: #{mlp_forward.3} parent=0 // pred_fallthru
    _
  %v26 = vld [vmem:[%s1] sm:$0xff]
  %v27 = vld [vmem:[%s1 + $0x8] sm:$0xff]
  %v28 = vld [vmem:[%s1 + $0x10] sm:$0xff]
  %v29 = vld [vmem:[%s1 + $0x18] sm:$0xff]
  %v30 = vld [vmem:[%s1 + $0x20] sm:$0xff]
  %v31 = vld [vmem:[%s1 + $0x28] sm:$0xff]
  %v32 = vld [vmem:[%s1 + $0x30] sm:$0xff]
  %v33 = vld [vmem:[%s1 + $0x38] sm:$0xff]
  %v34 = vld [vmem:[%s1 + $0x40] sm:$0xff]
  %v35 = vld [vmem:[%s1 + $0x48] sm:$0xff]
  %v36 = vld [vmem:[%s1 + $0x50] sm:$0xff]
  %v37 = vld [vmem:[%s1 + $0x58] sm:$0xff]
  %v38 = vld [vmem:[%s1 + $0x60] sm:$0xff]
  %v39 = vld [vmem:[%s1 + $0x68] sm:$0xff]
  %v40 = vld [vmem:[%s1 + $0x70] sm:$0xff]
  %v41 = vld [vmem:[%s1 + $0x78] sm:$0xff]
  %v42 = vld [vmem:[%s1 + $0x80] sm:$0xff]
  %v43 = vld [vmem:[%s1 + $0x88] sm:$0xff]
  %v44 = vld [vmem:[%s1 + $0x90] sm:$0xff]
  %v45 = vld [vmem:[%s1 + $0x98] sm:$0xff]
  %v46 = vld [vmem:[%s1 + $0xa0] sm:$0xff]
  %v47 = vld [vmem:[%s1 + $0xa8] sm:$0xff]
  %v48 = vld [vmem:[%s1 + $0xb0] sm:$0xff]
  %v49 = vld [vmem:[%s1 + $0xb8] sm:$0xff]
  %v50 = vld [vmem:[%s1 + $0xc0] sm:$0xff]
  %v51 = vld [vmem:[%s1 + $0xc8] sm:$0xff]
  %v52 = vld [vmem:[%s1 + $0xd0] sm:$0xff]
  %v53 = vld [vmem:[%s1 + $0xd8] sm:$0xff]
  %v54 = vld [vmem:[%s1 + $0xe0] sm:$0xff]
  %v55 = vld [vmem:[%s1 + $0xe8] sm:$0xff]
  %v56 = vld [vmem:[%s1 + $0xf0] sm:$0xff]
  %v57 = vld [vmem:[%s1 + $0xf8] sm:$0xff]
  %v58 = vld [vmem:[%s0] sm:$0xff]
  %v59 = vld [vmem:[%s0 + $0x8] sm:$0xff]
  %v60 = vld [vmem:[%s2] sm:$0xff]
  %v61 = vld [vmem:[%s2 + $0x8] sm:$0xff]
  %v62 = vld [vmem:[%s2 + $0x10] sm:$0xff]
  %v63 = vld [vmem:[%s2 + $0x18] sm:$0xff]
  %v64 = vld [vmem:[%s2 + $0x20] sm:$0xff]
  %v65 = vld [vmem:[%s2 + $0x28] sm:$0xff]
  %v66 = vld [vmem:[%s2 + $0x30] sm:$0xff]
  %v67 = vld [vmem:[%s2 + $0x38] sm:$0xff]
  %v68 = vld [vmem:[%s2 + $0x40] sm:$0xff]
  %v69 = vld [vmem:[%s2 + $0x48] sm:$0xff]
  %v70 = vld [vmem:[%s2 + $0x50] sm:$0xff]
  %v71 = vld [vmem:[%s2 + $0x58] sm:$0xff]
  %v72 = vld [vmem:[%s2 + $0x60] sm:$0xff]
  %v73 = vld [vmem:[%s2 + $0x68] sm:$0xff]
  %v74 = vld [vmem:[%s2 + $0x70] sm:$0xff]
  %v75 = vld [vmem:[%s2 + $0x78] sm:$0xff]
  %v76 = vld [vmem:[%s2 + $0x80] sm:$0xff]
  %v77 = vld [vmem:[%s2 + $0x88] sm:$0xff]
  %v78 = vld [vmem:[%s2 + $0x90] sm:$0xff]
  %v79 = vld [vmem:[%s2 + $0x98] sm:$0xff]
  %v80 = vld [vmem:[%s2 + $0xa0] sm:$0xff]
  %v81 = vld [vmem:[%s2 + $0xa8] sm:$0xff]
  %v82 = vld [vmem:[%s2 + $0xb0] sm:$0xff]
  %v83 = vld [vmem:[%s2 + $0xb8] sm:$0xff]
  %v84 = vld [vmem:[%s2 + $0xc0] sm:$0xff]
  %v85 = vld [vmem:[%s2 + $0xc8] sm:$0xff]
  %v86 = vld [vmem:[%s2 + $0xd0] sm:$0xff]
  %v87 = vld [vmem:[%s2 + $0xd8] sm:$0xff]
  %v88 = vld [vmem:[%s2 + $0xe0] sm:$0xff]
  %v89 = vld [vmem:[%s2 + $0xe8] sm:$0xff]
  %v90 = vld [vmem:[%s2 + $0xf0] sm:$0xff]
  %v91 = vld [vmem:[%s2 + $0xf8] sm:$0xff]
  %93 = vset.pattern.permute.xlu0 0
  %94 = vperm.xlu0 %93, %v60
  %v95 = vpop.permute.xlu0 %94
  %98 = vset.pattern.permute.xlu0 0
  %99 = vperm.xlu0 %98, %v61
  %v100 = vpop.permute.xlu0 %99
  %103 = vset.pattern.permute.xlu0 0
  %104 = vperm.xlu0 %103, %v62
  %v105 = vpop.permute.xlu0 %104
  %108 = vset.pattern.permute.xlu0 0
  %109 = vperm.xlu0 %108, %v63
  %v110 = vpop.permute.xlu0 %109
  %113 = vset.pattern.permute.xlu0 0
  %114 = vperm.xlu0 %113, %v64
  %v115 = vpop.permute.xlu0 %114
  %118 = vset.pattern.permute.xlu0 0
  %119 = vperm.xlu0 %118, %v65
  %v120 = vpop.permute.xlu0 %119
  %123 = vset.pattern.permute.xlu0 0
  %124 = vperm.xlu0 %123, %v66
  %v125 = vpop.permute.xlu0 %124
  %128 = vset.pattern.permute.xlu0 0
  %129 = vperm.xlu0 %128, %v67
  %v130 = vpop.permute.xlu0 %129
  %133 = vset.pattern.permute.xlu0 0
  %134 = vperm.xlu0 %133, %v68
  %v135 = vpop.permute.xlu0 %134
  %138 = vset.pattern.permute.xlu0 0
  %139 = vperm.xlu0 %138, %v69
  %v140 = vpop.permute.xlu0 %139
  %143 = vset.pattern.permute.xlu0 0
  %144 = vperm.xlu0 %143, %v70
  %v145 = vpop.permute.xlu0 %144
  %148 = vset.pattern.permute.xlu0 0
  %149 = vperm.xlu0 %148, %v71
  %v150 = vpop.permute.xlu0 %149
  %153 = vset.pattern.permute.xlu0 0
  %154 = vperm.xlu0 %153, %v72
  %v155 = vpop.permute.xlu0 %154
  %158 = vset.pattern.permute.xlu0 0
  %159 = vperm.xlu0 %158, %v73
  %v160 = vpop.permute.xlu0 %159
  %163 = vset.pattern.permute.xlu0 0
  %164 = vperm.xlu0 %163, %v74
  %v165 = vpop.permute.xlu0 %164
  %168 = vset.pattern.permute.xlu0 0
  %169 = vperm.xlu0 %168, %v75
  %v170 = vpop.permute.xlu0 %169
  %173 = vset.pattern.permute.xlu0 0
  %174 = vperm.xlu0 %173, %v76
  %v175 = vpop.permute.xlu0 %174
  %178 = vset.pattern.permute.xlu0 0
  %179 = vperm.xlu0 %178, %v77
  %v180 = vpop.permute.xlu0 %179
  %183 = vset.pattern.permute.xlu0 0
  %184 = vperm.xlu0 %183, %v78
  %v185 = vpop.permute.xlu0 %184
  %188 = vset.pattern.permute.xlu0 0
  %189 = vperm.xlu0 %188, %v79
  %v190 = vpop.permute.xlu0 %189
  %193 = vset.pattern.permute.xlu0 0
  %194 = vperm.xlu0 %193, %v80
  %v195 = vpop.permute.xlu0 %194
  %198 = vset.pattern.permute.xlu0 0
  %199 = vperm.xlu0 %198, %v81
  %v200 = vpop.permute.xlu0 %199
  %203 = vset.pattern.permute.xlu0 0
  %204 = vperm.xlu0 %203, %v82
  %v205 = vpop.permute.xlu0 %204
  %208 = vset.pattern.permute.xlu0 0
  %209 = vperm.xlu0 %208, %v83
  %v210 = vpop.permute.xlu0 %209
  %213 = vset.pattern.permute.xlu0 0
  %214 = vperm.xlu0 %213, %v84
  %v215 = vpop.permute.xlu0 %214
  %218 = vset.pattern.permute.xlu0 0
  %219 = vperm.xlu0 %218, %v85
  %v220 = vpop.permute.xlu0 %219
  %223 = vset.pattern.permute.xlu0 0
  %224 = vperm.xlu0 %223, %v86
  %v225 = vpop.permute.xlu0 %224
  %228 = vset.pattern.permute.xlu0 0
  %229 = vperm.xlu0 %228, %v87
  %v230 = vpop.permute.xlu0 %229
  %233 = vset.pattern.permute.xlu0 0
  %234 = vperm.xlu0 %233, %v88
  %v235 = vpop.permute.xlu0 %234
  %238 = vset.pattern.permute.xlu0 0
  %239 = vperm.xlu0 %238, %v89
  %v240 = vpop.permute.xlu0 %239
  %243 = vset.pattern.permute.xlu0 0
  %244 = vperm.xlu0 %243, %v90
  %v245 = vpop.permute.xlu0 %244
  %248 = vset.pattern.permute.xlu0 0
  %249 = vperm.xlu0 %248, %v91
  %v250 = vpop.permute.xlu0 %249
  %vm252 = vcmask 130048
  %v254 = vsel %vm252, %v26, 0
  %v257 = vsel %vm252, %v27, 0
  %v260 = vsel %vm252, %v28, 0
  %v263 = vsel %vm252, %v29, 0
  %v266 = vsel %vm252, %v30, 0
  %v269 = vsel %vm252, %v31, 0
  %v272 = vsel %vm252, %v32, 0
  %v275 = vsel %vm252, %v33, 0
  %v278 = vsel %vm252, %v34, 0
  %v281 = vsel %vm252, %v35, 0
  %v284 = vsel %vm252, %v36, 0
  %v287 = vsel %vm252, %v37, 0
  %v290 = vsel %vm252, %v38, 0
  %v293 = vsel %vm252, %v39, 0
  %v296 = vsel %vm252, %v40, 0
  %v299 = vsel %vm252, %v41, 0
  %v302 = vsel %vm252, %v42, 0
  %v305 = vsel %vm252, %v43, 0
  %v308 = vsel %vm252, %v44, 0
  %v311 = vsel %vm252, %v45, 0
  %v314 = vsel %vm252, %v46, 0
  %v317 = vsel %vm252, %v47, 0
  %v320 = vsel %vm252, %v48, 0
  %v323 = vsel %vm252, %v49, 0
  %v326 = vsel %vm252, %v50, 0
  %v329 = vsel %vm252, %v51, 0
  %v332 = vsel %vm252, %v52, 0
  %v335 = vsel %vm252, %v53, 0
  %v338 = vsel %vm252, %v54, 0
  %v341 = vsel %vm252, %v55, 0
  %v344 = vsel %vm252, %v56, 0
  %v347 = vsel %vm252, %v57, 0
  %349 = vmatprep.subr.mxu0 0.0
  %350 = vmatpush1.msra.mxu0 %v58
  %351 = vmatprep.subr.mxu0 0.0
  %352 = vmatpush1.msra.mxu0 %v59
  %353 = vmatprep.subr.mxu0 0.0
  %354 = vmatpush1.msra.mxu0 0.0
  %355 = vmatprep.subr.mxu0 0.0
  %356 = vmatpush1.msra.mxu0 0.0
  %357 = vmatprep.subr.mxu0 0.0
  %358 = vmatpush1.msra.mxu0 0.0
  %359 = vmatprep.subr.mxu0 0.0
  %360 = vmatpush1.msra.mxu0 0.0
  %361 = vmatprep.subr.mxu0 0.0
  %362 = vmatpush1.msra.mxu0 0.0
  %363 = vmatprep.subr.mxu0 0.0
  %364 = vmatpush1.msra.mxu0 0.0
  %365 = vmatprep.subr.mxu0 0.0
  %366 = vmatpush1.msra.mxu0 0.0
  %367 = vmatprep.subr.mxu0 0.0
  %368 = vmatpush1.msra.mxu0 0.0
  %369 = vmatprep.subr.mxu0 0.0
  %370 = vmatpush1.msra.mxu0 0.0
  %371 = vmatprep.subr.mxu0 0.0
  %372 = vmatpush1.msra.mxu0 0.0
  %373 = vmatprep.subr.mxu0 0.0
  %374 = vmatpush1.msra.mxu0 0.0
  %375 = vmatprep.subr.mxu0 0.0
  %376 = vmatpush1.msra.mxu0 0.0
  %377 = vmatprep.subr.mxu0 0.0
  %378 = vmatpush1.msra.mxu0 0.0
  %379 = vmatprep.subr.mxu0 0.0
  %380 = vmatpush1.msra.mxu0 0.0
  %381 = vmatprep.subr.mxu0 0.0
  %382 = vmatpush1.msra.mxu0 0.0
  %383 = vmatprep.subr.mxu0 0.0
  %384 = vmatpush1.msra.mxu0 0.0
  %385 = vmatprep.subr.mxu0 0.0
  %386 = vmatpush1.msra.mxu0 0.0
  %387 = vmatprep.subr.mxu0 0.0
  %388 = vmatpush1.msra.mxu0 0.0
  %389 = vmatprep.subr.mxu0 0.0
  %390 = vmatpush1.msra.mxu0 0.0
  %391 = vmatprep.subr.mxu0 0.0
  %392 = vmatpush1.msra.mxu0 0.0
  %393 = vmatprep.subr.mxu0 0.0
  %394 = vmatpush1.msra.mxu0 0.0
  %395 = vmatprep.subr.mxu0 0.0
  %396 = vmatpush1.msra.mxu0 0.0
  %397 = vmatprep.subr.mxu0 0.0
  %398 = vmatpush1.msra.mxu0 0.0
  %399 = vmatprep.subr.mxu0 0.0
  %400 = vmatpush1.msra.mxu0 0.0
  %401 = vmatprep.subr.mxu0 0.0
  %402 = vmatpush1.msra.mxu0 0.0
  %403 = vmatprep.subr.mxu0 0.0
  %404 = vmatpush1.msra.mxu0 0.0
  %405 = vmatprep.subr.mxu0 0.0
  %406 = vmatpush1.msra.mxu0 0.0
  %407 = vmatprep.subr.mxu0 0.0
  %408 = vmatpush1.msra.mxu0 0.0
  %409 = vmatprep.subr.mxu0 0.0
  %410 = vmatpush1.msra.mxu0 0.0
  %411 = vmatprep.subr.mxu0 0.0
  %412 = vmatpush1.msra.mxu0 0.0
  %413 = vmatprep.mubr.f32.mxu0 0.0
  %414 = vmatmul.mubr.f32.gmra.mrb[0].mxu0 %v254
  %v415 = vpop.f32.mrb[0].mxu0
  %v416 = vadd.f32 %v95, %v415
  %v417 = vpop.f32.mrb[0].mxu0
  %418 = vmatprep.mubr.f32.mxu0 0.0
  %419 = vmatmul.mubr.f32.gmra.mrb[0].mxu0 %v257
  %v420 = vpop.f32.mrb[0].mxu0
  %v421 = vadd.f32 %v100, %v420
  %v422 = vpop.f32.mrb[0].mxu0
  %423 = vmatprep.mubr.f32.mxu0 0.0
  %424 = vmatmul.mubr.f32.gmra.mrb[0].mxu0 %v260
  %v425 = vpop.f32.mrb[0].mxu0
  %v426 = vadd.f32 %v105, %v425
  %v427 = vpop.f32.mrb[0].mxu0
  %428 = vmatprep.mubr.f32.mxu0 0.0
  %429 = vmatmul.mubr.f32.gmra.mrb[0].mxu0 %v263
  %v430 = vpop.f32.mrb[0].mxu0
  %v431 = vadd.f32 %v110, %v430
  %v432 = vpop.f32.mrb[0].mxu0
  %433 = vmatprep.mubr.f32.mxu0 0.0
  %434 = vmatmul.mubr.f32.gmra.mrb[0].mxu0 %v266
  %v435 = vpop.f32.mrb[0].mxu0
  %v436 = vadd.f32 %v115, %v435
  %v437 = vpop.f32.mrb[0].mxu0
  %438 = vmatprep.mubr.f32.mxu0 0.0
  %439 = vmatmul.mubr.f32.gmra.mrb[0].mxu0 %v269
  %v440 = vpop.f32.mrb[0].mxu0
  %v441 = vadd.f32 %v120, %v440
  %v442 = vpop.f32.mrb[0].mxu0
  %443 = vmatprep.mubr.f32.mxu0 0.0
  %444 = vmatmul.mubr.f32.gmra.mrb[0].mxu0 %v272
  %v445 = vpop.f32.mrb[0].mxu0
  %v446 = vadd.f32 %v125, %v445
  %v447 = vpop.f32.mrb[0].mxu0
  %448 = vmatprep.mubr.f32.mxu0 0.0
  %449 = vmatmul.mubr.f32.gmra.mrb[0].mxu0 %v275
  %v450 = vpop.f32.mrb[0].mxu0
  %v451 = vadd.f32 %v130, %v450
  %v452 = vpop.f32.mrb[0].mxu0
  %453 = vmatprep.mubr.f32.mxu0 0.0
  %454 = vmatmul.mubr.f32.gmra.mrb[0].mxu0 %v278
  %v455 = vpop.f32.mrb[0].mxu0
  %v456 = vadd.f32 %v135, %v455
  %v457 = vpop.f32.mrb[0].mxu0
  %458 = vmatprep.mubr.f32.mxu0 0.0
  %459 = vmatmul.mubr.f32.gmra.mrb[0].mxu0 %v281
  %v460 = vpop.f32.mrb[0].mxu0
  %v461 = vadd.f32 %v140, %v460
  %v462 = vpop.f32.mrb[0].mxu0
  %463 = vmatprep.mubr.f32.mxu0 0.0
  %464 = vmatmul.mubr.f32.gmra.mrb[0].mxu0 %v284
  %v465 = vpop.f32.mrb[0].mxu0
  %v466 = vadd.f32 %v145, %v465
  %v467 = vpop.f32.mrb[0].mxu0
  %468 = vmatprep.mubr.f32.mxu0 0.0
  %469 = vmatmul.mubr.f32.gmra.mrb[0].mxu0 %v287
  %v470 = vpop.f32.mrb[0].mxu0
  %v471 = vadd.f32 %v150, %v470
  %v472 = vpop.f32.mrb[0].mxu0
  %473 = vmatprep.mubr.f32.mxu0 0.0
  %474 = vmatmul.mubr.f32.gmra.mrb[0].mxu0 %v290
  %v475 = vpop.f32.mrb[0].mxu0
  %v476 = vadd.f32 %v155, %v475
  %v477 = vpop.f32.mrb[0].mxu0
  %478 = vmatprep.mubr.f32.mxu0 0.0
  %479 = vmatmul.mubr.f32.gmra.mrb[0].mxu0 %v293
  %v480 = vpop.f32.mrb[0].mxu0
  %v481 = vadd.f32 %v160, %v480
  %v482 = vpop.f32.mrb[0].mxu0
  %483 = vmatprep.mubr.f32.mxu0 0.0
  %484 = vmatmul.mubr.f32.gmra.mrb[0].mxu0 %v296
  %v485 = vpop.f32.mrb[0].mxu0
  %v486 = vadd.f32 %v165, %v485
  %v487 = vpop.f32.mrb[0].mxu0
  %488 = vmatprep.mubr.f32.mxu0 0.0
  %489 = vmatmul.mubr.f32.gmra.mrb[0].mxu0 %v299
  %v490 = vpop.f32.mrb[0].mxu0
  %v491 = vadd.f32 %v170, %v490
  %v492 = vpop.f32.mrb[0].mxu0
  %493 = vmatprep.mubr.f32.mxu0 0.0
  %494 = vmatmul.mubr.f32.gmra.mrb[0].mxu0 %v302
  %v495 = vpop.f32.mrb[0].mxu0
  %v496 = vadd.f32 %v175, %v495
  %v497 = vpop.f32.mrb[0].mxu0
  %498 = vmatprep.mubr.f32.mxu0 0.0
  %499 = vmatmul.mubr.f32.gmra.mrb[0].mxu0 %v305
  %v500 = vpop.f32.mrb[0].mxu0
  %v501 = vadd.f32 %v180, %v500
  %v502 = vpop.f32.mrb[0].mxu0
  %503 = vmatprep.mubr.f32.mxu0 0.0
  %504 = vmatmul.mubr.f32.gmra.mrb[0].mxu0 %v308
  %v505 = vpop.f32.mrb[0].mxu0
  %v506 = vadd.f32 %v185, %v505
  %v507 = vpop.f32.mrb[0].mxu0
  %508 = vmatprep.mubr.f32.mxu0 0.0
  %509 = vmatmul.mubr.f32.gmra.mrb[0].mxu0 %v311
  %v510 = vpop.f32.mrb[0].mxu0
  %v511 = vadd.f32 %v190, %v510
  %v512 = vpop.f32.mrb[0].mxu0
  %513 = vmatprep.mubr.f32.mxu0 0.0
  %514 = vmatmul.mubr.f32.gmra.mrb[0].mxu0 %v314
  %v515 = vpop.f32.mrb[0].mxu0
  %v516 = vadd.f32 %v195, %v515
  %v517 = vpop.f32.mrb[0].mxu0
  %518 = vmatprep.mubr.f32.mxu0 0.0
  %519 = vmatmul.mubr.f32.gmra.mrb[0].mxu0 %v317
  %v520 = vpop.f32.mrb[0].mxu0
  %v521 = vadd.f32 %v200, %v520
  %v522 = vpop.f32.mrb[0].mxu0
  %523 = vmatprep.mubr.f32.mxu0 0.0
  %524 = vmatmul.mubr.f32.gmra.mrb[0].mxu0 %v320
  %v525 = vpop.f32.mrb[0].mxu0
  %v526 = vadd.f32 %v205, %v525
  %v527 = vpop.f32.mrb[0].mxu0
  %528 = vmatprep.mubr.f32.mxu0 0.0
  %529 = vmatmul.mubr.f32.gmra.mrb[0].mxu0 %v323
  %v530 = vpop.f32.mrb[0].mxu0
  %v531 = vadd.f32 %v210, %v530
  %v532 = vpop.f32.mrb[0].mxu0
  %533 = vmatprep.mubr.f32.mxu0 0.0
  %534 = vmatmul.mubr.f32.gmra.mrb[0].mxu0 %v326
  %v535 = vpop.f32.mrb[0].mxu0
  %v536 = vadd.f32 %v215, %v535
  %v537 = vpop.f32.mrb[0].mxu0
  %538 = vmatprep.mubr.f32.mxu0 0.0
  %539 = vmatmul.mubr.f32.gmra.mrb[0].mxu0 %v329
  %v540 = vpop.f32.mrb[0].mxu0
  %v541 = vadd.f32 %v220, %v540
  %v542 = vpop.f32.mrb[0].mxu0
  %543 = vmatprep.mubr.f32.mxu0 0.0
  %544 = vmatmul.mubr.f32.gmra.mrb[0].mxu0 %v332
  %v545 = vpop.f32.mrb[0].mxu0
  %v546 = vadd.f32 %v225, %v545
  %v547 = vpop.f32.mrb[0].mxu0
  %548 = vmatprep.mubr.f32.mxu0 0.0
  %549 = vmatmul.mubr.f32.gmra.mrb[0].mxu0 %v335
  %v550 = vpop.f32.mrb[0].mxu0
  %v551 = vadd.f32 %v230, %v550
  %v552 = vpop.f32.mrb[0].mxu0
  %553 = vmatprep.mubr.f32.mxu0 0.0
  %554 = vmatmul.mubr.f32.gmra.mrb[0].mxu0 %v338
  %v555 = vpop.f32.mrb[0].mxu0
  %v556 = vadd.f32 %v235, %v555
  %v557 = vpop.f32.mrb[0].mxu0
  %558 = vmatprep.mubr.f32.mxu0 0.0
  %559 = vmatmul.mubr.f32.gmra.mrb[0].mxu0 %v341
  %v560 = vpop.f32.mrb[0].mxu0
  %v561 = vadd.f32 %v240, %v560
  %v562 = vpop.f32.mrb[0].mxu0
  %563 = vmatprep.mubr.f32.mxu0 0.0
  %564 = vmatmul.mubr.f32.gmra.mrb[0].mxu0 %v344
  %v565 = vpop.f32.mrb[0].mxu0
  %v566 = vadd.f32 %v245, %v565
  %v567 = vpop.f32.mrb[0].mxu0
  %568 = vmatprep.mubr.f32.mxu0 0.0
  %569 = vmatmul.mubr.f32.gmra.mrb[0].mxu0 %v347
  %v570 = vpop.f32.mrb[0].mxu0
  %v571 = vadd.f32 %v250, %v570
  %v572 = vpop.f32.mrb[0].mxu0
  %573 = vdwg.mxu0
  %v574 = vmax.f32 %v416, 0.0
  %v575 = vmax.f32 %v421, 0.0
  %v576 = vmax.f32 %v426, 0.0
  %v577 = vmax.f32 %v431, 0.0
  %v578 = vmax.f32 %v436, 0.0
  %v579 = vmax.f32 %v441, 0.0
  %v580 = vmax.f32 %v446, 0.0
  %v581 = vmax.f32 %v451, 0.0
  %v582 = vmax.f32 %v456, 0.0
  %v583 = vmax.f32 %v461, 0.0
  %v584 = vmax.f32 %v466, 0.0
  %v585 = vmax.f32 %v471, 0.0
  %v586 = vmax.f32 %v476, 0.0
  %v587 = vmax.f32 %v481, 0.0
  %v588 = vmax.f32 %v486, 0.0
  %v589 = vmax.f32 %v491, 0.0
  %v590 = vmax.f32 %v496, 0.0
  %v591 = vmax.f32 %v501, 0.0
  %v592 = vmax.f32 %v506, 0.0
  %v593 = vmax.f32 %v511, 0.0
  %v594 = vmax.f32 %v516, 0.0
  %v595 = vmax.f32 %v521, 0.0
  %v596 = vmax.f32 %v526, 0.0
  %v597 = vmax.f32 %v531, 0.0
  %v598 = vmax.f32 %v536, 0.0
  %v599 = vmax.f32 %v541, 0.0
  %v600 = vmax.f32 %v546, 0.0
  %v601 = vmax.f32 %v551, 0.0
  %v602 = vmax.f32 %v556, 0.0
  %v603 = vmax.f32 %v561, 0.0
  %v604 = vmax.f32 %v566, 0.0
  %v605 = vmax.f32 %v571, 0.0
  %v606 = vld [vmem:[%s3] sm:$0xff]
  %v607 = vld [vmem:[%s3 + $0x8] sm:$0xff]
  %v608 = vld [vmem:[%s3 + $0x10] sm:$0xff]
  %v609 = vld [vmem:[%s3 + $0x18] sm:$0xff]
  %v610 = vld [vmem:[%s3 + $0x20] sm:$0xff]
  %v611 = vld [vmem:[%s3 + $0x28] sm:$0xff]
  %v612 = vld [vmem:[%s3 + $0x30] sm:$0xff]
  %v613 = vld [vmem:[%s3 + $0x38] sm:$0xff]
  %v614 = vld [vmem:[%s3 + $0x40] sm:$0xff]
  %v615 = vld [vmem:[%s3 + $0x48] sm:$0xff]
  %v616 = vld [vmem:[%s3 + $0x50] sm:$0xff]
  %v617 = vld [vmem:[%s3 + $0x58] sm:$0xff]
  %v618 = vld [vmem:[%s3 + $0x60] sm:$0xff]
  %v619 = vld [vmem:[%s3 + $0x68] sm:$0xff]
  %v620 = vld [vmem:[%s3 + $0x70] sm:$0xff]
  %v621 = vld [vmem:[%s3 + $0x78] sm:$0xff]
  %v622 = vld [vmem:[%s3 + $0x80] sm:$0xff]
  %v623 = vld [vmem:[%s3 + $0x88] sm:$0xff]
  %v624 = vld [vmem:[%s3 + $0x90] sm:$0xff]
  %v625 = vld [vmem:[%s3 + $0x98] sm:$0xff]
  %v626 = vld [vmem:[%s3 + $0xa0] sm:$0xff]
  %v627 = vld [vmem:[%s3 + $0xa8] sm:$0xff]
  %v628 = vld [vmem:[%s3 + $0xb0] sm:$0xff]
  %v629 = vld [vmem:[%s3 + $0xb8] sm:$0xff]
  %v630 = vld [vmem:[%s3 + $0xc0] sm:$0xff]
  %v631 = vld [vmem:[%s3 + $0xc8] sm:$0xff]
  %v632 = vld [vmem:[%s3 + $0xd0] sm:$0xff]
  %v633 = vld [vmem:[%s3 + $0xd8] sm:$0xff]
  %v634 = vld [vmem:[%s3 + $0xe0] sm:$0xff]
  %v635 = vld [vmem:[%s3 + $0xe8] sm:$0xff]
  %v636 = vld [vmem:[%s3 + $0xf0] sm:$0xff]
  %v637 = vld [vmem:[%s3 + $0xf8] sm:$0xff]
  %639 = vset.pattern.permute.xlu0 0
  %640 = vperm.xlu0 %639, %v606
  %v641 = vpop.permute.xlu0 %640
  %644 = vset.pattern.permute.xlu0 0
  %645 = vperm.xlu0 %644, %v607
  %v646 = vpop.permute.xlu0 %645
  %649 = vset.pattern.permute.xlu0 0
  %650 = vperm.xlu0 %649, %v608
  %v651 = vpop.permute.xlu0 %650
  %654 = vset.pattern.permute.xlu0 0
  %655 = vperm.xlu0 %654, %v609
  %v656 = vpop.permute.xlu0 %655
  %659 = vset.pattern.permute.xlu0 0
  %660 = vperm.xlu0 %659, %v610
  %v661 = vpop.permute.xlu0 %660
  %664 = vset.pattern.permute.xlu0 0
  %665 = vperm.xlu0 %664, %v611
  %v666 = vpop.permute.xlu0 %665
  %669 = vset.pattern.permute.xlu0 0
  %670 = vperm.xlu0 %669, %v612
  %v671 = vpop.permute.xlu0 %670
  %674 = vset.pattern.permute.xlu0 0
  %675 = vperm.xlu0 %674, %v613
  %v676 = vpop.permute.xlu0 %675
  %679 = vset.pattern.permute.xlu0 0
  %680 = vperm.xlu0 %679, %v614
  %v681 = vpop.permute.xlu0 %680
  %684 = vset.pattern.permute.xlu0 0
  %685 = vperm.xlu0 %684, %v615
  %v686 = vpop.permute.xlu0 %685
  %689 = vset.pattern.permute.xlu0 0
  %690 = vperm.xlu0 %689, %v616
  %v691 = vpop.permute.xlu0 %690
  %694 = vset.pattern.permute.xlu0 0
  %695 = vperm.xlu0 %694, %v617
  %v696 = vpop.permute.xlu0 %695
  %699 = vset.pattern.permute.xlu0 0
  %700 = vperm.xlu0 %699, %v618
  %v701 = vpop.permute.xlu0 %700
  %704 = vset.pattern.permute.xlu0 0
  %705 = vperm.xlu0 %704, %v619
  %v706 = vpop.permute.xlu0 %705
  %709 = vset.pattern.permute.xlu0 0
  %710 = vperm.xlu0 %709, %v620
  %v711 = vpop.permute.xlu0 %710
  %714 = vset.pattern.permute.xlu0 0
  %715 = vperm.xlu0 %714, %v621
  %v716 = vpop.permute.xlu0 %715
  %719 = vset.pattern.permute.xlu0 0
  %720 = vperm.xlu0 %719, %v622
  %v721 = vpop.permute.xlu0 %720
  %724 = vset.pattern.permute.xlu0 0
  %725 = vperm.xlu0 %724, %v623
  %v726 = vpop.permute.xlu0 %725
  %729 = vset.pattern.permute.xlu0 0
  %730 = vperm.xlu0 %729, %v624
  %v731 = vpop.permute.xlu0 %730
  %734 = vset.pattern.permute.xlu0 0
  %735 = vperm.xlu0 %734, %v625
  %v736 = vpop.permute.xlu0 %735
  %739 = vset.pattern.permute.xlu0 0
  %740 = vperm.xlu0 %739, %v626
  %v741 = vpop.permute.xlu0 %740
  %744 = vset.pattern.permute.xlu0 0
  %745 = vperm.xlu0 %744, %v627
  %v746 = vpop.permute.xlu0 %745
  %749 = vset.pattern.permute.xlu0 0
  %750 = vperm.xlu0 %749, %v628
  %v751 = vpop.permute.xlu0 %750
  %754 = vset.pattern.permute.xlu0 0
  %755 = vperm.xlu0 %754, %v629
  %v756 = vpop.permute.xlu0 %755
  %759 = vset.pattern.permute.xlu0 0
  %760 = vperm.xlu0 %759, %v630
  %v761 = vpop.permute.xlu0 %760
  %764 = vset.pattern.permute.xlu0 0
  %765 = vperm.xlu0 %764, %v631
  %v766 = vpop.permute.xlu0 %765
  %769 = vset.pattern.permute.xlu0 0
  %770 = vperm.xlu0 %769, %v632
  %v771 = vpop.permute.xlu0 %770
  %774 = vset.pattern.permute.xlu0 0
  %775 = vperm.xlu0 %774, %v633
  %v776 = vpop.permute.xlu0 %775
  %779 = vset.pattern.permute.xlu0 0
  %780 = vperm.xlu0 %779, %v634
  %v781 = vpop.permute.xlu0 %780
  %784 = vset.pattern.permute.xlu0 0
  %785 = vperm.xlu0 %784, %v635
  %v786 = vpop.permute.xlu0 %785
  %789 = vset.pattern.permute.xlu0 0
  %790 = vperm.xlu0 %789, %v636
  %v791 = vpop.permute.xlu0 %790
  %794 = vset.pattern.permute.xlu0 0
  %795 = vperm.xlu0 %794, %v637
  %v796 = vpop.permute.xlu0 %795
  %v798 = vmul.f32 %v574, %v641
  %v799 = vmul.f32 %v575, %v646
  %v800 = vmul.f32 %v576, %v651
  %v801 = vmul.f32 %v577, %v656
  %v802 = vmul.f32 %v578, %v661
  %v803 = vmul.f32 %v579, %v666
  %v804 = vmul.f32 %v580, %v671
  %v805 = vmul.f32 %v581, %v676
  %v806 = vmul.f32 %v582, %v681
  %v807 = vmul.f32 %v583, %v686
  %v808 = vmul.f32 %v584, %v691
  %v809 = vmul.f32 %v585, %v696
  %v810 = vmul.f32 %v586, %v701
  %v811 = vmul.f32 %v587, %v706
  %v812 = vmul.f32 %v588, %v711
  %v813 = vmul.f32 %v589, %v716
  %v814 = vmul.f32 %v590, %v721
  %v815 = vmul.f32 %v591, %v726
  %v816 = vmul.f32 %v592, %v731
  %v817 = vmul.f32 %v593, %v736
  %v818 = vmul.f32 %v594, %v741
  %v819 = vmul.f32 %v595, %v746
  %v820 = vmul.f32 %v596, %v751
  %v821 = vmul.f32 %v597, %v756
  %v822 = vmul.f32 %v598, %v761
  %v823 = vmul.f32 %v599, %v766
  %v824 = vmul.f32 %v600, %v771
  %v825 = vmul.f32 %v601, %v776
  %v826 = vmul.f32 %v602, %v781
  %v827 = vmul.f32 %v603, %v786
  %v828 = vmul.f32 %v604, %v791
  %v829 = vmul.f32 %v605, %v796
  %v830 = vld [vmem:[%s4] sm:$0xff]
  %v831 = vld [vmem:[%s4 + $0x8] sm:$0xff]
  %v832 = vld [vmem:[%s4 + $0x10] sm:$0xff]
  %v833 = vld [vmem:[%s4 + $0x18] sm:$0xff]
  %v834 = vld [vmem:[%s4 + $0x20] sm:$0xff]
  %v835 = vld [vmem:[%s4 + $0x28] sm:$0xff]
  %v836 = vld [vmem:[%s4 + $0x30] sm:$0xff]
  %v837 = vld [vmem:[%s4 + $0x38] sm:$0xff]
  %v838 = vld [vmem:[%s4 + $0x40] sm:$0xff]
  %v839 = vld [vmem:[%s4 + $0x48] sm:$0xff]
  %v840 = vld [vmem:[%s4 + $0x50] sm:$0xff]
  %v841 = vld [vmem:[%s4 + $0x58] sm:$0xff]
  %v842 = vld [vmem:[%s4 + $0x60] sm:$0xff]
  %v843 = vld [vmem:[%s4 + $0x68] sm:$0xff]
  %v844 = vld [vmem:[%s4 + $0x70] sm:$0xff]
  %v845 = vld [vmem:[%s4 + $0x78] sm:$0xff]
  %v846 = vld [vmem:[%s4 + $0x80] sm:$0xff]
  %v847 = vld [vmem:[%s4 + $0x88] sm:$0xff]
  %v848 = vld [vmem:[%s4 + $0x90] sm:$0xff]
  %v849 = vld [vmem:[%s4 + $0x98] sm:$0xff]
  %v850 = vld [vmem:[%s4 + $0xa0] sm:$0xff]
  %v851 = vld [vmem:[%s4 + $0xa8] sm:$0xff]
  %v852 = vld [vmem:[%s4 + $0xb0] sm:$0xff]
  %v853 = vld [vmem:[%s4 + $0xb8] sm:$0xff]
  %v854 = vld [vmem:[%s4 + $0xc0] sm:$0xff]
  %v855 = vld [vmem:[%s4 + $0xc8] sm:$0xff]
  %v856 = vld [vmem:[%s4 + $0xd0] sm:$0xff]
  %v857 = vld [vmem:[%s4 + $0xd8] sm:$0xff]
  %v858 = vld [vmem:[%s4 + $0xe0] sm:$0xff]
  %v859 = vld [vmem:[%s4 + $0xe8] sm:$0xff]
  %v860 = vld [vmem:[%s4 + $0xf0] sm:$0xff]
  %v861 = vld [vmem:[%s4 + $0xf8] sm:$0xff]
  %863 = vset.pattern.permute.xlu0 0
  %864 = vperm.xlu0 %863, %v830
  %v865 = vpop.permute.xlu0 %864
  %868 = vset.pattern.permute.xlu0 0
  %869 = vperm.xlu0 %868, %v831
  %v870 = vpop.permute.xlu0 %869
  %873 = vset.pattern.permute.xlu0 0
  %874 = vperm.xlu0 %873, %v832
  %v875 = vpop.permute.xlu0 %874
  %878 = vset.pattern.permute.xlu0 0
  %879 = vperm.xlu0 %878, %v833
  %v880 = vpop.permute.xlu0 %879
  %883 = vset.pattern.permute.xlu0 0
  %884 = vperm.xlu0 %883, %v834
  %v885 = vpop.permute.xlu0 %884
  %888 = vset.pattern.permute.xlu0 0
  %889 = vperm.xlu0 %888, %v835
  %v890 = vpop.permute.xlu0 %889
  %893 = vset.pattern.permute.xlu0 0
  %894 = vperm.xlu0 %893, %v836
  %v895 = vpop.permute.xlu0 %894
  %898 = vset.pattern.permute.xlu0 0
  %899 = vperm.xlu0 %898, %v837
  %v900 = vpop.permute.xlu0 %899
  %903 = vset.pattern.permute.xlu0 0
  %904 = vperm.xlu0 %903, %v838
  %v905 = vpop.permute.xlu0 %904
  %908 = vset.pattern.permute.xlu0 0
  %909 = vperm.xlu0 %908, %v839
  %v910 = vpop.permute.xlu0 %909
  %913 = vset.pattern.permute.xlu0 0
  %914 = vperm.xlu0 %913, %v840
  %v915 = vpop.permute.xlu0 %914
  %918 = vset.pattern.permute.xlu0 0
  %919 = vperm.xlu0 %918, %v841
  %v920 = vpop.permute.xlu0 %919
  %923 = vset.pattern.permute.xlu0 0
  %924 = vperm.xlu0 %923, %v842
  %v925 = vpop.permute.xlu0 %924
  %928 = vset.pattern.permute.xlu0 0
  %929 = vperm.xlu0 %928, %v843
  %v930 = vpop.permute.xlu0 %929
  %933 = vset.pattern.permute.xlu0 0
  %934 = vperm.xlu0 %933, %v844
  %v935 = vpop.permute.xlu0 %934
  %938 = vset.pattern.permute.xlu0 0
  %939 = vperm.xlu0 %938, %v845
  %v940 = vpop.permute.xlu0 %939
  %943 = vset.pattern.permute.xlu0 0
  %944 = vperm.xlu0 %943, %v846
  %v945 = vpop.permute.xlu0 %944
  %948 = vset.pattern.permute.xlu0 0
  %949 = vperm.xlu0 %948, %v847
  %v950 = vpop.permute.xlu0 %949
  %953 = vset.pattern.permute.xlu0 0
  %954 = vperm.xlu0 %953, %v848
  %v955 = vpop.permute.xlu0 %954
  %958 = vset.pattern.permute.xlu0 0
  %959 = vperm.xlu0 %958, %v849
  %v960 = vpop.permute.xlu0 %959
  %963 = vset.pattern.permute.xlu0 0
  %964 = vperm.xlu0 %963, %v850
  %v965 = vpop.permute.xlu0 %964
  %968 = vset.pattern.permute.xlu0 0
  %969 = vperm.xlu0 %968, %v851
  %v970 = vpop.permute.xlu0 %969
  %973 = vset.pattern.permute.xlu0 0
  %974 = vperm.xlu0 %973, %v852
  %v975 = vpop.permute.xlu0 %974
  %978 = vset.pattern.permute.xlu0 0
  %979 = vperm.xlu0 %978, %v853
  %v980 = vpop.permute.xlu0 %979
  %983 = vset.pattern.permute.xlu0 0
  %984 = vperm.xlu0 %983, %v854
  %v985 = vpop.permute.xlu0 %984
  %988 = vset.pattern.permute.xlu0 0
  %989 = vperm.xlu0 %988, %v855
  %v990 = vpop.permute.xlu0 %989
  %993 = vset.pattern.permute.xlu0 0
  %994 = vperm.xlu0 %993, %v856
  %v995 = vpop.permute.xlu0 %994
  %998 = vset.pattern.permute.xlu0 0
  %999 = vperm.xlu0 %998, %v857
  %v1000 = vpop.permute.xlu0 %999
  %1003 = vset.pattern.permute.xlu0 0
  %1004 = vperm.xlu0 %1003, %v858
  %v1005 = vpop.permute.xlu0 %1004
  %1008 = vset.pattern.permute.xlu0 0
  %1009 = vperm.xlu0 %1008, %v859
  %v1010 = vpop.permute.xlu0 %1009
  %1013 = vset.pattern.permute.xlu0 0
  %1014 = vperm.xlu0 %1013, %v860
  %v1015 = vpop.permute.xlu0 %1014
  %1018 = vset.pattern.permute.xlu0 0
  %1019 = vperm.xlu0 %1018, %v861
  %v1020 = vpop.permute.xlu0 %1019
  %v1022 = vadd.f32 %v798, %v865
  %v1023 = vadd.f32 %v799, %v870
  %v1024 = vadd.f32 %v800, %v875
  %v1025 = vadd.f32 %v801, %v880
  %v1026 = vadd.f32 %v802, %v885
  %v1027 = vadd.f32 %v803, %v890
  %v1028 = vadd.f32 %v804, %v895
  %v1029 = vadd.f32 %v805, %v900
  %v1030 = vadd.f32 %v806, %v905
  %v1031 = vadd.f32 %v807, %v910
  %v1032 = vadd.f32 %v808, %v915
  %v1033 = vadd.f32 %v809, %v920
  %v1034 = vadd.f32 %v810, %v925
  %v1035 = vadd.f32 %v811, %v930
  %v1036 = vadd.f32 %v812, %v935
  %v1037 = vadd.f32 %v813, %v940
  %v1038 = vadd.f32 %v814, %v945
  %v1039 = vadd.f32 %v815, %v950
  %v1040 = vadd.f32 %v816, %v955
  %v1041 = vadd.f32 %v817, %v960
  %v1042 = vadd.f32 %v818, %v965
  %v1043 = vadd.f32 %v819, %v970
  %v1044 = vadd.f32 %v820, %v975
  %v1045 = vadd.f32 %v821, %v980
  %v1046 = vadd.f32 %v822, %v985
  %v1047 = vadd.f32 %v823, %v990
  %v1048 = vadd.f32 %v824, %v995
  %v1049 = vadd.f32 %v825, %v1000
  %v1050 = vadd.f32 %v826, %v1005
  %v1051 = vadd.f32 %v827, %v1010
  %v1052 = vadd.f32 %v828, %v1015
  %v1053 = vadd.f32 %v829, %v1020
  %v1054 = vld [vmem:[%s5] sm:$0x77]
  %v1055 = vld [vmem:[%s6] sm:$0x7]
  %1057 = vset.pattern.permute.xlu0 0
  %1058 = vperm.xlu0 %1057, %v1055
  %v1059 = vpop.permute.xlu0 %1058
  %v1062 = vcombine.high %v1054, %v1054
  %1064 = vmatprep.subr.mxu0 0.0
  %1065 = vmatpush1.msra.mxu0 %v1022
  %1066 = vmatprep.subr.mxu0 0.0
  %1067 = vmatpush1.msra.mxu0 %v1023
  %1068 = vmatprep.subr.mxu0 0.0
  %1069 = vmatpush1.msra.mxu0 %v1024
  %1070 = vmatprep.subr.mxu0 0.0
  %1071 = vmatpush1.msra.mxu0 %v1025
  %1072 = vmatprep.subr.mxu0 0.0
  %1073 = vmatpush1.msra.mxu0 %v1026
  %1074 = vmatprep.subr.mxu0 0.0
  %1075 = vmatpush1.msra.mxu0 %v1027
  %1076 = vmatprep.subr.mxu0 0.0
  %1077 = vmatpush1.msra.mxu0 %v1028
  %1078 = vmatprep.subr.mxu0 0.0
  %1079 = vmatpush1.msra.mxu0 %v1029
  %1080 = vmatprep.subr.mxu0 0.0
  %1081 = vmatpush1.msra.mxu0 %v1030
  %1082 = vmatprep.subr.mxu0 0.0
  %1083 = vmatpush1.msra.mxu0 %v1031
  %1084 = vmatprep.subr.mxu0 0.0
  %1085 = vmatpush1.msra.mxu0 %v1032
  %1086 = vmatprep.subr.mxu0 0.0
  %1087 = vmatpush1.msra.mxu0 %v1033
  %1088 = vmatprep.subr.mxu0 0.0
  %1089 = vmatpush1.msra.mxu0 %v1034
  %1090 = vmatprep.subr.mxu0 0.0
  %1091 = vmatpush1.msra.mxu0 %v1035
  %1092 = vmatprep.subr.mxu0 0.0
  %1093 = vmatpush1.msra.mxu0 %v1036
  %1094 = vmatprep.subr.mxu0 0.0
  %1095 = vmatpush1.msra.mxu0 %v1037
  %1096 = vmatprep.subr.mxu0 0.0
  %1097 = vmatpush1.msra.mxu0 %v1038
  %1098 = vmatprep.subr.mxu0 0.0
  %1099 = vmatpush1.msra.mxu0 %v1039
  %1100 = vmatprep.subr.mxu0 0.0
  %1101 = vmatpush1.msra.mxu0 %v1040
  %1102 = vmatprep.subr.mxu0 0.0
  %1103 = vmatpush1.msra.mxu0 %v1041
  %1104 = vmatprep.subr.mxu0 0.0
  %1105 = vmatpush1.msra.mxu0 %v1042
  %1106 = vmatprep.subr.mxu0 0.0
  %1107 = vmatpush1.msra.mxu0 %v1043
  %1108 = vmatprep.subr.mxu0 0.0
  %1109 = vmatpush1.msra.mxu0 %v1044
  %1110 = vmatprep.subr.mxu0 0.0
  %1111 = vmatpush1.msra.mxu0 %v1045
  %1112 = vmatprep.subr.mxu0 0.0
  %1113 = vmatpush1.msra.mxu0 %v1046
  %1114 = vmatprep.subr.mxu0 0.0
  %1115 = vmatpush1.msra.mxu0 %v1047
  %1116 = vmatprep.subr.mxu0 0.0
  %1117 = vmatpush1.msra.mxu0 %v1048
  %1118 = vmatprep.subr.mxu0 0.0
  %1119 = vmatpush1.msra.mxu0 %v1049
  %1120 = vmatprep.subr.mxu0 0.0
  %1121 = vmatpush1.msra.mxu0 %v1050
  %1122 = vmatprep.subr.mxu0 0.0
  %1123 = vmatpush1.msra.mxu0 %v1051
  %1124 = vmatprep.subr.mxu0 0.0
  %1125 = vmatpush1.msra.mxu0 %v1052
  %1126 = vmatprep.subr.mxu0 0.0
  %1127 = vmatpush1.msra.mxu0 %v1053
  %1128 = vmatprep.mubr.f32.mxu0 %v1062
  %1129 = vmatmul.mubr.f32.gmra.mrb[0].mxu0 %v1054
  %v1130 = vpop.f32.mrb[0].mxu0
  %v1131 = vadd.f32 %v1059, %v1130
  %v1132 = vpop.f32.mrb[0].mxu0
  %1133 = vdwg.mxu0
  %vm1134 = vcmask 1042432
  %v1135 = vsel %vm1134, %v1131, -inf
  %v1136 = vrot.slane %v1135, 4
  %v1137 = vmax.f32 %v1135, %v1136
  %v1138 = vrot.slane %v1137, 2
  %v1139 = vmax.f32 %v1137, %v1138
  %v1140 = vrot.slane %v1139, 1
  %v1141 = vmax.f32 %v1139, %v1140
  %v1142 = vsub.f32 %v1131, %v1141
  %v1143 = vmul.f32 %v1142, 1.442695
  %v1144 = vpow.pop %v1143
  %v1145 = vsel %vm1134, %v1144, 0.0
  %v1146 = vrot.slane %v1145, 4
  %v1147 = vadd.f32 %v1145, %v1146
  %v1148 = vrot.slane %v1147, 2
  %v1149 = vadd.f32 %v1147, %v1148
  %v1150 = vrot.slane %v1149, 1
  %v1151 = vadd.f32 %v1149, %v1150
  %v1152 = vrcp.pop %v1151
  %v1153 = vmul.f32 %v1144, %v1152
  %1154 = vst [vmem:[%s7] sm:$0x7] %v1153
  // Predicated region
  $region30: #{mlp_forward.3} parent=0 // pred_check
    _
  $region31: #{mlp_forward.3} parent=0 // pred_check_branch
    %1156 = sbr.rel (0) target = $region33
  $region32: #{mlp_forward.3} parent=0 // pred_region
    _
  $region33: #{mlp_forward.3} parent=0 // pred_fallthru
    _
  // Predicated region
  $region34: #{mlp_forward.3} parent=0 // pred_check
    _
  $region35: #{mlp_forward.3} parent=0 // pred_check_branch
    %1158 = sbr.rel (0) target = $region37
  $region36: #{mlp_forward.3} parent=0 // pred_region
    _
  $region37: #{mlp_forward.3} parent=0 // pred_fallthru
    _

// kernel: mlp_forward.2
$region0: #{mlp_forward.2}
  #allocation0 [shape = 'u32[]', space=smem, size = 0x4, offset = 0x4, fixed_abs, tag = 'smem constant byte address 0x4 - core index']
  #allocation1 [shape = 'u32[144,128]{1,0:T(1,128)}', space=vmem, size = 0x12000, scoped, tag = 'internal scratch']
  %s0 = inlined_call_operand.vmem [shape: f32[16,128], index: 0, kind: input, shape index: {}]
  %s1 = inlined_call_operand.vmem [shape: f32[256,16], index: 1, kind: input, shape index: {}]
  %s2 = inlined_call_operand.vmem [shape: f32[256,1], index: 2, kind: input, shape index: {}]
  %s3 = inlined_call_operand.vmem [shape: f32[256,1], index: 3, kind: output, shape index: {0}]
  %s4 = inlined_call_operand.vmem [shape: f32[256,1], index: 4, kind: output, shape index: {1}]
  %5 = xla_tuple %s3, %s4
  %s6 = sld [smem:[#allocation0]]
  $region34: #{mlp_forward.2} parent=0
    _
  %s8 = ssub.s32 1, %s6
  %s9 = scalar_select 0, %s8, %s6
  // Predicated region
  $region2: #{mlp_forward.2} parent=0 // pred_check
    _
  $region3: #{mlp_forward.2} parent=0 // pred_check_branch
    %11 = sbr.rel (0) target = $region5
  $region4: #{mlp_forward.2} parent=0 // pred_region
    _
  $region5: #{mlp_forward.2} parent=0 // pred_fallthru
    _
  // Predicated region
  $region6: #{mlp_forward.2} parent=0 // pred_check
    _
  $region7: #{mlp_forward.2} parent=0 // pred_check_branch
    %13 = sbr.rel (0) target = $region9
  $region8: #{mlp_forward.2} parent=0 // pred_region
    _
  $region9: #{mlp_forward.2} parent=0 // pred_fallthru
    _
  // Predicated region
  $region10: #{mlp_forward.2} parent=0 // pred_check
    _
  $region11: #{mlp_forward.2} parent=0 // pred_check_branch
    %15 = sbr.rel (0) target = $region13
  $region12: #{mlp_forward.2} parent=0 // pred_region
    _
  $region13: #{mlp_forward.2} parent=0 // pred_fallthru
    _
  %v16 = vld [vmem:[%s1] sm:$0xff]
  %v17 = vld [vmem:[%s1 + $0x8] sm:$0xff]
  %v18 = vld [vmem:[%s1 + $0x10] sm:$0xff]
  %v19 = vld [vmem:[%s1 + $0x18] sm:$0xff]
  %v20 = vld [vmem:[%s1 + $0x20] sm:$0xff]
  %v21 = vld [vmem:[%s1 + $0x28] sm:$0xff]
  %v22 = vld [vmem:[%s1 + $0x30] sm:$0xff]
  %v23 = vld [vmem:[%s1 + $0x38] sm:$0xff]
  %v24 = vld [vmem:[%s1 + $0x40] sm:$0xff]
  %v25 = vld [vmem:[%s1 + $0x48] sm:$0xff]
  %v26 = vld [vmem:[%s1 + $0x50] sm:$0xff]
  %v27 = vld [vmem:[%s1 + $0x58] sm:$0xff]
  %v28 = vld [vmem:[%s1 + $0x60] sm:$0xff]
  %v29 = vld [vmem:[%s1 + $0x68] sm:$0xff]
  %v30 = vld [vmem:[%s1 + $0x70] sm:$0xff]
  %v31 = vld [vmem:[%s1 + $0x78] sm:$0xff]
  %v32 = vld [vmem:[%s1 + $0x80] sm:$0xff]
  %v33 = vld [vmem:[%s1 + $0x88] sm:$0xff]
  %v34 = vld [vmem:[%s1 + $0x90] sm:$0xff]
  %v35 = vld [vmem:[%s1 + $0x98] sm:$0xff]
  %v36 = vld [vmem:[%s1 + $0xa0] sm:$0xff]
  %v37 = vld [vmem:[%s1 + $0xa8] sm:$0xff]
  %v38 = vld [vmem:[%s1 + $0xb0] sm:$0xff]
  %v39 = vld [vmem:[%s1 + $0xb8] sm:$0xff]
  %v40 = vld [vmem:[%s1 + $0xc0] sm:$0xff]
  %v41 = vld [vmem:[%s1 + $0xc8] sm:$0xff]
  %v42 = vld [vmem:[%s1 + $0xd0] sm:$0xff]
  %v43 = vld [vmem:[%s1 + $0xd8] sm:$0xff]
  %v44 = vld [vmem:[%s1 + $0xe0] sm:$0xff]
  %v45 = vld [vmem:[%s1 + $0xe8] sm:$0xff]
  %v46 = vld [vmem:[%s1 + $0xf0] sm:$0xff]
  %v47 = vld [vmem:[%s1 + $0xf8] sm:$0xff]
  %v48 = vld [vmem:[%s0] sm:$0xff]
  %v49 = vld [vmem:[%s0 + $0x8] sm:$0xff]
  %v50 = vld [vmem:[%s2] sm:$0xff]
  %v51 = vld [vmem:[%s2 + $0x8] sm:$0xff]
  %v52 = vld [vmem:[%s2 + $0x10] sm:$0xff]
  %v53 = vld [vmem:[%s2 + $0x18] sm:$0xff]
  %v54 = vld [vmem:[%s2 + $0x20] sm:$0xff]
  %v55 = vld [vmem:[%s2 + $0x28] sm:$0xff]
  %v56 = vld [vmem:[%s2 + $0x30] sm:$0xff]
  %v57 = vld [vmem:[%s2 + $0x38] sm:$0xff]
  %v58 = vld [vmem:[%s2 + $0x40] sm:$0xff]
  %v59 = vld [vmem:[%s2 + $0x48] sm:$0xff]
  %v60 = vld [vmem:[%s2 + $0x50] sm:$0xff]
  %v61 = vld [vmem:[%s2 + $0x58] sm:$0xff]
  %v62 = vld [vmem:[%s2 + $0x60] sm:$0xff]
  %v63 = vld [vmem:[%s2 + $0x68] sm:$0xff]
  %v64 = vld [vmem:[%s2 + $0x70] sm:$0xff]
  %v65 = vld [vmem:[%s2 + $0x78] sm:$0xff]
  %v66 = vld [vmem:[%s2 + $0x80] sm:$0xff]
  %v67 = vld [vmem:[%s2 + $0x88] sm:$0xff]
  %v68 = vld [vmem:[%s2 + $0x90] sm:$0xff]
  %v69 = vld [vmem:[%s2 + $0x98] sm:$0xff]
  %v70 = vld [vmem:[%s2 + $0xa0] sm:$0xff]
  %v71 = vld [vmem:[%s2 + $0xa8] sm:$0xff]
  %v72 = vld [vmem:[%s2 + $0xb0] sm:$0xff]
  %v73 = vld [vmem:[%s2 + $0xb8] sm:$0xff]
  %v74 = vld [vmem:[%s2 + $0xc0] sm:$0xff]
  %v75 = vld [vmem:[%s2 + $0xc8] sm:$0xff]
  %v76 = vld [vmem:[%s2 + $0xd0] sm:$0xff]
  %v77 = vld [vmem:[%s2 + $0xd8] sm:$0xff]
  %v78 = vld [vmem:[%s2 + $0xe0] sm:$0xff]
  %v79 = vld [vmem:[%s2 + $0xe8] sm:$0xff]
  %v80 = vld [vmem:[%s2 + $0xf0] sm:$0xff]
  %v81 = vld [vmem:[%s2 + $0xf8] sm:$0xff]
  %83 = vset.pattern.permute.xlu0 0
  %84 = vperm.xlu0 %83, %v50
  %v85 = vpop.permute.xlu0 %84
  %88 = vset.pattern.permute.xlu0 0
  %89 = vperm.xlu0 %88, %v51
  %v90 = vpop.permute.xlu0 %89
  %93 = vset.pattern.permute.xlu0 0
  %94 = vperm.xlu0 %93, %v52
  %v95 = vpop.permute.xlu0 %94
  %98 = vset.pattern.permute.xlu0 0
  %99 = vperm.xlu0 %98, %v53
  %v100 = vpop.permute.xlu0 %99
  %103 = vset.pattern.permute.xlu0 0
  %104 = vperm.xlu0 %103, %v54
  %v105 = vpop.permute.xlu0 %104
  %108 = vset.pattern.permute.xlu0 0
  %109 = vperm.xlu0 %108, %v55
  %v110 = vpop.permute.xlu0 %109
  %113 = vset.pattern.permute.xlu0 0
  %114 = vperm.xlu0 %113, %v56
  %v115 = vpop.permute.xlu0 %114
  %118 = vset.pattern.permute.xlu0 0
  %119 = vperm.xlu0 %118, %v57
  %v120 = vpop.permute.xlu0 %119
  %123 = vset.pattern.permute.xlu0 0
  %124 = vperm.xlu0 %123, %v58
  %v125 = vpop.permute.xlu0 %124
  %128 = vset.pattern.permute.xlu0 0
  %129 = vperm.xlu0 %128, %v59
  %v130 = vpop.permute.xlu0 %129
  %133 = vset.pattern.permute.xlu0 0
  %134 = vperm.xlu0 %133, %v60
  %v135 = vpop.permute.xlu0 %134
  %138 = vset.pattern.permute.xlu0 0
  %139 = vperm.xlu0 %138, %v61
  %v140 = vpop.permute.xlu0 %139
  %143 = vset.pattern.permute.xlu0 0
  %144 = vperm.xlu0 %143, %v62
  %v145 = vpop.permute.xlu0 %144
  %148 = vset.pattern.permute.xlu0 0
  %149 = vperm.xlu0 %148, %v63
  %v150 = vpop.permute.xlu0 %149
  %153 = vset.pattern.permute.xlu0 0
  %154 = vperm.xlu0 %153, %v64
  %v155 = vpop.permute.xlu0 %154
  %158 = vset.pattern.permute.xlu0 0
  %159 = vperm.xlu0 %158, %v65
  %v160 = vpop.permute.xlu0 %159
  %163 = vset.pattern.permute.xlu0 0
  %164 = vperm.xlu0 %163, %v66
  %v165 = vpop.permute.xlu0 %164
  %168 = vset.pattern.permute.xlu0 0
  %169 = vperm.xlu0 %168, %v67
  %v170 = vpop.permute.xlu0 %169
  %173 = vset.pattern.permute.xlu0 0
  %174 = vperm.xlu0 %173, %v68
  %v175 = vpop.permute.xlu0 %174
  %178 = vset.pattern.permute.xlu0 0
  %179 = vperm.xlu0 %178, %v69
  %v180 = vpop.permute.xlu0 %179
  %183 = vset.pattern.permute.xlu0 0
  %184 = vperm.xlu0 %183, %v70
  %v185 = vpop.permute.xlu0 %184
  %188 = vset.pattern.permute.xlu0 0
  %189 = vperm.xlu0 %188, %v71
  %v190 = vpop.permute.xlu0 %189
  %193 = vset.pattern.permute.xlu0 0
  %194 = vperm.xlu0 %193, %v72
  %v195 = vpop.permute.xlu0 %194
  %198 = vset.pattern.permute.xlu0 0
  %199 = vperm.xlu0 %198, %v73
  %v200 = vpop.permute.xlu0 %199
  %203 = vset.pattern.permute.xlu0 0
  %204 = vperm.xlu0 %203, %v74
  %v205 = vpop.permute.xlu0 %204
  %208 = vset.pattern.permute.xlu0 0
  %209 = vperm.xlu0 %208, %v75
  %v210 = vpop.permute.xlu0 %209
  %213 = vset.pattern.permute.xlu0 0
  %214 = vperm.xlu0 %213, %v76
  %v215 = vpop.permute.xlu0 %214
  %218 = vset.pattern.permute.xlu0 0
  %219 = vperm.xlu0 %218, %v77
  %v220 = vpop.permute.xlu0 %219
  %223 = vset.pattern.permute.xlu0 0
  %224 = vperm.xlu0 %223, %v78
  %v225 = vpop.permute.xlu0 %224
  %228 = vset.pattern.permute.xlu0 0
  %229 = vperm.xlu0 %228, %v79
  %v230 = vpop.permute.xlu0 %229
  %233 = vset.pattern.permute.xlu0 0
  %234 = vperm.xlu0 %233, %v80
  %v235 = vpop.permute.xlu0 %234
  %238 = vset.pattern.permute.xlu0 0
  %239 = vperm.xlu0 %238, %v81
  %v240 = vpop.permute.xlu0 %239
  %vm242 = vcmask 130048
  %v244 = vsel %vm242, %v16, 0
  %v247 = vsel %vm242, %v17, 0
  %v250 = vsel %vm242, %v18, 0
  %v253 = vsel %vm242, %v19, 0
  %v256 = vsel %vm242, %v20, 0
  %v259 = vsel %vm242, %v21, 0
  %v262 = vsel %vm242, %v22, 0
  %v265 = vsel %vm242, %v23, 0
  %v268 = vsel %vm242, %v24, 0
  %v271 = vsel %vm242, %v25, 0
  %v274 = vsel %vm242, %v26, 0
  %v277 = vsel %vm242, %v27, 0
  %v280 = vsel %vm242, %v28, 0
  %v283 = vsel %vm242, %v29, 0
  %v286 = vsel %vm242, %v30, 0
  %v289 = vsel %vm242, %v31, 0
  %v292 = vsel %vm242, %v32, 0
  %v295 = vsel %vm242, %v33, 0
  %v298 = vsel %vm242, %v34, 0
  %v301 = vsel %vm242, %v35, 0
  %v304 = vsel %vm242, %v36, 0
  %v307 = vsel %vm242, %v37, 0
  %v310 = vsel %vm242, %v38, 0
  %v313 = vsel %vm242, %v39, 0
  %v316 = vsel %vm242, %v40, 0
  %v319 = vsel %vm242, %v41, 0
  %v322 = vsel %vm242, %v42, 0
  %v325 = vsel %vm242, %v43, 0
  %v328 = vsel %vm242, %v44, 0
  %v331 = vsel %vm242, %v45, 0
  %v334 = vsel %vm242, %v46, 0
  %v337 = vsel %vm242, %v47, 0
  %339 = vmatprep.subr.mxu0 0.0
  %340 = vmatpush1.msra.mxu0 %v48
  %341 = vmatprep.subr.mxu0 0.0
  %342 = vmatpush1.msra.mxu0 %v49
  %343 = vmatprep.subr.mxu0 0.0
  %344 = vmatpush1.msra.mxu0 0.0
  %345 = vmatprep.subr.mxu0 0.0
  %346 = vmatpush1.msra.mxu0 0.0
  %347 = vmatprep.subr.mxu0 0.0
  %348 = vmatpush1.msra.mxu0 0.0
  %349 = vmatprep.subr.mxu0 0.0
  %350 = vmatpush1.msra.mxu0 0.0
  %351 = vmatprep.subr.mxu0 0.0
  %352 = vmatpush1.msra.mxu0 0.0
  %353 = vmatprep.subr.mxu0 0.0
  %354 = vmatpush1.msra.mxu0 0.0
  %355 = vmatprep.subr.mxu0 0.0
  %356 = vmatpush1.msra.mxu0 0.0
  %357 = vmatprep.subr.mxu0 0.0
  %358 = vmatpush1.msra.mxu0 0.0
  %359 = vmatprep.subr.mxu0 0.0
  %360 = vmatpush1.msra.mxu0 0.0
  %361 = vmatprep.subr.mxu0 0.0
  %362 = vmatpush1.msra.mxu0 0.0
  %363 = vmatprep.subr.mxu0 0.0
  %364 = vmatpush1.msra.mxu0 0.0
  %365 = vmatprep.subr.mxu0 0.0
  %366 = vmatpush1.msra.mxu0 0.0
  %367 = vmatprep.subr.mxu0 0.0
  %368 = vmatpush1.msra.mxu0 0.0
  %369 = vmatprep.subr.mxu0 0.0
  %370 = vmatpush1.msra.mxu0 0.0
  %371 = vmatprep.subr.mxu0 0.0
  %372 = vmatpush1.msra.mxu0 0.0
  %373 = vmatprep.subr.mxu0 0.0
  %374 = vmatpush1.msra.mxu0 0.0
  %375 = vmatprep.subr.mxu0 0.0
  %376 = vmatpush1.msra.mxu0 0.0
  %377 = vmatprep.subr.mxu0 0.0
  %378 = vmatpush1.msra.mxu0 0.0
  %379 = vmatprep.subr.mxu0 0.0
  %380 = vmatpush1.msra.mxu0 0.0
  %381 = vmatprep.subr.mxu0 0.0
  %382 = vmatpush1.msra.mxu0 0.0
  %383 = vmatprep.subr.mxu0 0.0
  %384 = vmatpush1.msra.mxu0 0.0
  %385 = vmatprep.subr.mxu0 0.0
  %386 = vmatpush1.msra.mxu0 0.0
  %387 = vmatprep.subr.mxu0 0.0
  %388 = vmatpush1.msra.mxu0 0.0
  %389 = vmatprep.subr.mxu0 0.0
  %390 = vmatpush1.msra.mxu0 0.0
  %391 = vmatprep.subr.mxu0 0.0
  %392 = vmatpush1.msra.mxu0 0.0
  %393 = vmatprep.subr.mxu0 0.0
  %394 = vmatpush1.msra.mxu0 0.0
  %395 = vmatprep.subr.mxu0 0.0
  %396 = vmatpush1.msra.mxu0 0.0
  %397 = vmatprep.subr.mxu0 0.0
  %398 = vmatpush1.msra.mxu0 0.0
  %399 = vmatprep.subr.mxu0 0.0
  %400 = vmatpush1.msra.mxu0 0.0
  %401 = vmatprep.subr.mxu0 0.0
  %402 = vmatpush1.msra.mxu0 0.0
  %403 = vmatprep.mubr.f32.mxu0 0.0
  %404 = vmatmul.mubr.f32.gmra.mrb[0].mxu0 %v244
  %v405 = vpop.f32.mrb[0].mxu0
  %v406 = vadd.f32 %v85, %v405
  %v407 = vpop.f32.mrb[0].mxu0
  %408 = vmatprep.mubr.f32.mxu0 0.0
  %409 = vmatmul.mubr.f32.gmra.mrb[0].mxu0 %v247
  %v410 = vpop.f32.mrb[0].mxu0
  %v411 = vadd.f32 %v90, %v410
  %v412 = vpop.f32.mrb[0].mxu0
  %413 = vmatprep.mubr.f32.mxu0 0.0
  %414 = vmatmul.mubr.f32.gmra.mrb[0].mxu0 %v250
  %v415 = vpop.f32.mrb[0].mxu0
  %v416 = vadd.f32 %v95, %v415
  %v417 = vpop.f32.mrb[0].mxu0
  %418 = vmatprep.mubr.f32.mxu0 0.0
  %419 = vmatmul.mubr.f32.gmra.mrb[0].mxu0 %v253
  %v420 = vpop.f32.mrb[0].mxu0
  %v421 = vadd.f32 %v100, %v420
  %v422 = vpop.f32.mrb[0].mxu0
  %423 = vmatprep.mubr.f32.mxu0 0.0
  %424 = vmatmul.mubr.f32.gmra.mrb[0].mxu0 %v256
  %v425 = vpop.f32.mrb[0].mxu0
  %v426 = vadd.f32 %v105, %v425
  %v427 = vpop.f32.mrb[0].mxu0
  %428 = vmatprep.mubr.f32.mxu0 0.0
  %429 = vmatmul.mubr.f32.gmra.mrb[0].mxu0 %v259
  %v430 = vpop.f32.mrb[0].mxu0
  %v431 = vadd.f32 %v110, %v430
  %v432 = vpop.f32.mrb[0].mxu0
  %433 = vmatprep.mubr.f32.mxu0 0.0
  %434 = vmatmul.mubr.f32.gmra.mrb[0].mxu0 %v262
  %v435 = vpop.f32.mrb[0].mxu0
  %v436 = vadd.f32 %v115, %v435
  %v437 = vpop.f32.mrb[0].mxu0
  %438 = vmatprep.mubr.f32.mxu0 0.0
  %439 = vmatmul.mubr.f32.gmra.mrb[0].mxu0 %v265
  %v440 = vpop.f32.mrb[0].mxu0
  %v441 = vadd.f32 %v120, %v440
  %v442 = vpop.f32.mrb[0].mxu0
  %443 = vmatprep.mubr.f32.mxu0 0.0
  %444 = vmatmul.mubr.f32.gmra.mrb[0].mxu0 %v268
  %v445 = vpop.f32.mrb[0].mxu0
  %v446 = vadd.f32 %v125, %v445
  %v447 = vpop.f32.mrb[0].mxu0
  %448 = vmatprep.mubr.f32.mxu0 0.0
  %449 = vmatmul.mubr.f32.gmra.mrb[0].mxu0 %v271
  %v450 = vpop.f32.mrb[0].mxu0
  %v451 = vadd.f32 %v130, %v450
  %v452 = vpop.f32.mrb[0].mxu0
  %453 = vmatprep.mubr.f32.mxu0 0.0
  %454 = vmatmul.mubr.f32.gmra.mrb[0].mxu0 %v274
  %v455 = vpop.f32.mrb[0].mxu0
  %v456 = vadd.f32 %v135, %v455
  %v457 = vpop.f32.mrb[0].mxu0
  %458 = vmatprep.mubr.f32.mxu0 0.0
  %459 = vmatmul.mubr.f32.gmra.mrb[0].mxu0 %v277
  %v460 = vpop.f32.mrb[0].mxu0
  %v461 = vadd.f32 %v140, %v460
  %v462 = vpop.f32.mrb[0].mxu0
  %463 = vmatprep.mubr.f32.mxu0 0.0
  %464 = vmatmul.mubr.f32.gmra.mrb[0].mxu0 %v280
  %v465 = vpop.f32.mrb[0].mxu0
  %v466 = vadd.f32 %v145, %v465
  %v467 = vpop.f32.mrb[0].mxu0
  %468 = vmatprep.mubr.f32.mxu0 0.0
  %469 = vmatmul.mubr.f32.gmra.mrb[0].mxu0 %v283
  %v470 = vpop.f32.mrb[0].mxu0
  %v471 = vadd.f32 %v150, %v470
  %v472 = vpop.f32.mrb[0].mxu0
  %473 = vmatprep.mubr.f32.mxu0 0.0
  %474 = vmatmul.mubr.f32.gmra.mrb[0].mxu0 %v286
  %v475 = vpop.f32.mrb[0].mxu0
  %v476 = vadd.f32 %v155, %v475
  %v477 = vpop.f32.mrb[0].mxu0
  %478 = vmatprep.mubr.f32.mxu0 0.0
  %479 = vmatmul.mubr.f32.gmra.mrb[0].mxu0 %v289
  %v480 = vpop.f32.mrb[0].mxu0
  %v481 = vadd.f32 %v160, %v480
  %v482 = vpop.f32.mrb[0].mxu0
  %483 = vmatprep.mubr.f32.mxu0 0.0
  %484 = vmatmul.mubr.f32.gmra.mrb[0].mxu0 %v292
  %v485 = vpop.f32.mrb[0].mxu0
  %v486 = vadd.f32 %v165, %v485
  %v487 = vpop.f32.mrb[0].mxu0
  %488 = vmatprep.mubr.f32.mxu0 0.0
  %489 = vmatmul.mubr.f32.gmra.mrb[0].mxu0 %v295
  %v490 = vpop.f32.mrb[0].mxu0
  %v491 = vadd.f32 %v170, %v490
  %v492 = vpop.f32.mrb[0].mxu0
  %493 = vmatprep.mubr.f32.mxu0 0.0
  %494 = vmatmul.mubr.f32.gmra.mrb[0].mxu0 %v298
  %v495 = vpop.f32.mrb[0].mxu0
  %v496 = vadd.f32 %v175, %v495
  %v497 = vpop.f32.mrb[0].mxu0
  %498 = vmatprep.mubr.f32.mxu0 0.0
  %499 = vmatmul.mubr.f32.gmra.mrb[0].mxu0 %v301
  %v500 = vpop.f32.mrb[0].mxu0
  %v501 = vadd.f32 %v180, %v500
  %v502 = vpop.f32.mrb[0].mxu0
  %503 = vmatprep.mubr.f32.mxu0 0.0
  %504 = vmatmul.mubr.f32.gmra.mrb[0].mxu0 %v304
  %v505 = vpop.f32.mrb[0].mxu0
  %v506 = vadd.f32 %v185, %v505
  %v507 = vpop.f32.mrb[0].mxu0
  %508 = vmatprep.mubr.f32.mxu0 0.0
  %509 = vmatmul.mubr.f32.gmra.mrb[0].mxu0 %v307
  %v510 = vpop.f32.mrb[0].mxu0
  %v511 = vadd.f32 %v190, %v510
  %v512 = vpop.f32.mrb[0].mxu0
  %513 = vmatprep.mubr.f32.mxu0 0.0
  %514 = vmatmul.mubr.f32.gmra.mrb[0].mxu0 %v310
  %v515 = vpop.f32.mrb[0].mxu0
  %v516 = vadd.f32 %v195, %v515
  %v517 = vpop.f32.mrb[0].mxu0
  %518 = vmatprep.mubr.f32.mxu0 0.0
  %519 = vmatmul.mubr.f32.gmra.mrb[0].mxu0 %v313
  %v520 = vpop.f32.mrb[0].mxu0
  %v521 = vadd.f32 %v200, %v520
  %v522 = vpop.f32.mrb[0].mxu0
  %523 = vmatprep.mubr.f32.mxu0 0.0
  %524 = vmatmul.mubr.f32.gmra.mrb[0].mxu0 %v316
  %v525 = vpop.f32.mrb[0].mxu0
  %v526 = vadd.f32 %v205, %v525
  %v527 = vpop.f32.mrb[0].mxu0
  %528 = vmatprep.mubr.f32.mxu0 0.0
  %529 = vmatmul.mubr.f32.gmra.mrb[0].mxu0 %v319
  %v530 = vpop.f32.mrb[0].mxu0
  %v531 = vadd.f32 %v210, %v530
  %v532 = vpop.f32.mrb[0].mxu0
  %533 = vmatprep.mubr.f32.mxu0 0.0
  %534 = vmatmul.mubr.f32.gmra.mrb[0].mxu0 %v322
  %v535 = vpop.f32.mrb[0].mxu0
  %v536 = vadd.f32 %v215, %v535
  %v537 = vpop.f32.mrb[0].mxu0
  %538 = vmatprep.mubr.f32.mxu0 0.0
  %539 = vmatmul.mubr.f32.gmra.mrb[0].mxu0 %v325
  %v540 = vpop.f32.mrb[0].mxu0
  %v541 = vadd.f32 %v220, %v540
  %v542 = vpop.f32.mrb[0].mxu0
  %543 = vmatprep.mubr.f32.mxu0 0.0
  %544 = vmatmul.mubr.f32.gmra.mrb[0].mxu0 %v328
  %v545 = vpop.f32.mrb[0].mxu0
  %v546 = vadd.f32 %v225, %v545
  %v547 = vpop.f32.mrb[0].mxu0
  %548 = vmatprep.mubr.f32.mxu0 0.0
  %549 = vmatmul.mubr.f32.gmra.mrb[0].mxu0 %v331
  %v550 = vpop.f32.mrb[0].mxu0
  %v551 = vadd.f32 %v230, %v550
  %v552 = vpop.f32.mrb[0].mxu0
  %553 = vmatprep.mubr.f32.mxu0 0.0
  %554 = vmatmul.mubr.f32.gmra.mrb[0].mxu0 %v334
  %v555 = vpop.f32.mrb[0].mxu0
  %v556 = vadd.f32 %v235, %v555
  %v557 = vpop.f32.mrb[0].mxu0
  %558 = vmatprep.mubr.f32.mxu0 0.0
  %559 = vmatmul.mubr.f32.gmra.mrb[0].mxu0 %v337
  %v560 = vpop.f32.mrb[0].mxu0
  %v561 = vadd.f32 %v240, %v560
  %v562 = vpop.f32.mrb[0].mxu0
  %563 = vdwg.mxu0
  %v564 = vmax.f32 %v406, 0.0
  %v565 = vmax.f32 %v411, 0.0
  %v566 = vmax.f32 %v416, 0.0
  %v567 = vmax.f32 %v421, 0.0
  %v568 = vmax.f32 %v426, 0.0
  %v569 = vmax.f32 %v431, 0.0
  %v570 = vmax.f32 %v436, 0.0
  %v571 = vmax.f32 %v441, 0.0
  %v572 = vmax.f32 %v446, 0.0
  %v573 = vmax.f32 %v451, 0.0
  %v574 = vmax.f32 %v456, 0.0
  %v575 = vmax.f32 %v461, 0.0
  %v576 = vmax.f32 %v466, 0.0
  %v577 = vmax.f32 %v471, 0.0
  %v578 = vmax.f32 %v476, 0.0
  %v579 = vmax.f32 %v481, 0.0
  %v580 = vmax.f32 %v486, 0.0
  %v581 = vmax.f32 %v491, 0.0
  %v582 = vmax.f32 %v496, 0.0
  %v583 = vmax.f32 %v501, 0.0
  %v584 = vmax.f32 %v506, 0.0
  %v585 = vmax.f32 %v511, 0.0
  %v586 = vmax.f32 %v516, 0.0
  %v587 = vmax.f32 %v521, 0.0
  %v588 = vmax.f32 %v526, 0.0
  %v589 = vmax.f32 %v531, 0.0
  %v590 = vmax.f32 %v536, 0.0
  %v591 = vmax.f32 %v541, 0.0
  %v592 = vmax.f32 %v546, 0.0
  %v593 = vmax.f32 %v551, 0.0
  %v594 = vmax.f32 %v556, 0.0
  %v595 = vmax.f32 %v561, 0.0
  %s596 = smul.u32 0, 128
  %v597 = vlaneseq
  %v598 = vand.u32 %v597, 127
  %v599 = vstv %s596
  %v600 = vadd.s32 %v599, %v598
  %vm601 = vcmp.lt.s32.totalorder %v600, 8
  %v602 = vsel %vm601, %v564, 0.0
  %v603 = vsel %vm601, %v565, 0.0
  %v604 = vsel %vm601, %v566, 0.0
  %v605 = vsel %vm601, %v567, 0.0
  %v606 = vsel %vm601, %v568, 0.0
  %v607 = vsel %vm601, %v569, 0.0
  %v608 = vsel %vm601, %v570, 0.0
  %v609 = vsel %vm601, %v571, 0.0
  %v610 = vsel %vm601, %v572, 0.0
  %v611 = vsel %vm601, %v573, 0.0
  %v612 = vsel %vm601, %v574, 0.0
  %v613 = vsel %vm601, %v575, 0.0
  %v614 = vsel %vm601, %v576, 0.0
  %v615 = vsel %vm601, %v577, 0.0
  %v616 = vsel %vm601, %v578, 0.0
  %v617 = vsel %vm601, %v579, 0.0
  %v618 = vsel %vm601, %v580, 0.0
  %v619 = vsel %vm601, %v581, 0.0
  %v620 = vsel %vm601, %v582, 0.0
  %v621 = vsel %vm601, %v583, 0.0
  %v622 = vsel %vm601, %v584, 0.0
  %v623 = vsel %vm601, %v585, 0.0
  %v624 = vsel %vm601, %v586, 0.0
  %v625 = vsel %vm601, %v587, 0.0
  %v626 = vsel %vm601, %v588, 0.0
  %v627 = vsel %vm601, %v589, 0.0
  %v628 = vsel %vm601, %v590, 0.0
  %v629 = vsel %vm601, %v591, 0.0
  %v630 = vsel %vm601, %v592, 0.0
  %v631 = vsel %vm601, %v593, 0.0
  %v632 = vsel %vm601, %v594, 0.0
  %v633 = vsel %vm601, %v595, 0.0
  %634 = vadd.xlane.f32.xlu0 %v602
  %v635 = vpop.xlane.xlu0 %634
  %636 = vadd.xlane.f32.xlu0 %v603
  %v637 = vpop.xlane.xlu0 %636
  %638 = vadd.xlane.f32.xlu0 %v604
  %v639 = vpop.xlane.xlu0 %638
  %640 = vadd.xlane.f32.xlu0 %v605
  %v641 = vpop.xlane.xlu0 %640
  %642 = vadd.xlane.f32.xlu0 %v606
  %v643 = vpop.xlane.xlu0 %642
  %644 = vadd.xlane.f32.xlu0 %v607
  %v645 = vpop.xlane.xlu0 %644
  %646 = vadd.xlane.f32.xlu0 %v608
  %v647 = vpop.xlane.xlu0 %646
  %648 = vadd.xlane.f32.xlu0 %v609
  %v649 = vpop.xlane.xlu0 %648
  %650 = vadd.xlane.f32.xlu0 %v610
  %v651 = vpop.xlane.xlu0 %650
  %652 = vadd.xlane.f32.xlu0 %v611
  %v653 = vpop.xlane.xlu0 %652
  %654 = vadd.xlane.f32.xlu0 %v612
  %v655 = vpop.xlane.xlu0 %654
  %656 = vadd.xlane.f32.xlu0 %v613
  %v657 = vpop.xlane.xlu0 %656
  %658 = vadd.xlane.f32.xlu0 %v614
  %v659 = vpop.xlane.xlu0 %658
  %660 = vadd.xlane.f32.xlu0 %v615
  %v661 = vpop.xlane.xlu0 %660
  %662 = vadd.xlane.f32.xlu0 %v616
  %v663 = vpop.xlane.xlu0 %662
  %664 = vadd.xlane.f32.xlu0 %v617
  %v665 = vpop.xlane.xlu0 %664
  %666 = vadd.xlane.f32.xlu0 %v618
  %v667 = vpop.xlane.xlu0 %666
  %668 = vadd.xlane.f32.xlu0 %v619
  %v669 = vpop.xlane.xlu0 %668
  %670 = vadd.xlane.f32.xlu0 %v620
  %v671 = vpop.xlane.xlu0 %670
  %672 = vadd.xlane.f32.xlu0 %v621
  %v673 = vpop.xlane.xlu0 %672
  %674 = vadd.xlane.f32.xlu0 %v622
  %v675 = vpop.xlane.xlu0 %674
  %676 = vadd.xlane.f32.xlu0 %v623
  %v677 = vpop.xlane.xlu0 %676
  %678 = vadd.xlane.f32.xlu0 %v624
  %v679 = vpop.xlane.xlu0 %678
  %680 = vadd.xlane.f32.xlu0 %v625
  %v681 = vpop.xlane.xlu0 %680
  %682 = vadd.xlane.f32.xlu0 %v626
  %v683 = vpop.xlane.xlu0 %682
  %684 = vadd.xlane.f32.xlu0 %v627
  %v685 = vpop.xlane.xlu0 %684
  %686 = vadd.xlane.f32.xlu0 %v628
  %v687 = vpop.xlane.xlu0 %686
  %688 = vadd.xlane.f32.xlu0 %v629
  %v689 = vpop.xlane.xlu0 %688
  %690 = vadd.xlane.f32.xlu0 %v630
  %v691 = vpop.xlane.xlu0 %690
  %692 = vadd.xlane.f32.xlu0 %v631
  %v693 = vpop.xlane.xlu0 %692
  %694 = vadd.xlane.f32.xlu0 %v632
  %v695 = vpop.xlane.xlu0 %694
  %696 = vadd.xlane.f32.xlu0 %v633
  %v697 = vpop.xlane.xlu0 %696
  %v698 = vmul.f32 %v602, %v602
  %v699 = vmul.f32 %v603, %v603
  %v700 = vmul.f32 %v604, %v604
  %v701 = vmul.f32 %v605, %v605
  %v702 = vmul.f32 %v606, %v606
  %v703 = vmul.f32 %v607, %v607
  %v704 = vmul.f32 %v608, %v608
  %v705 = vmul.f32 %v609, %v609
  %v706 = vmul.f32 %v610, %v610
  %v707 = vmul.f32 %v611, %v611
  %v708 = vmul.f32 %v612, %v612
  %v709 = vmul.f32 %v613, %v613
  %v710 = vmul.f32 %v614, %v614
  %v711 = vmul.f32 %v615, %v615
  %v712 = vmul.f32 %v616, %v616
  %v713 = vmul.f32 %v617, %v617
  %v714 = vmul.f32 %v618, %v618
  %v715 = vmul.f32 %v619, %v619
  %v716 = vmul.f32 %v620, %v620
  %v717 = vmul.f32 %v621, %v621
  %v718 = vmul.f32 %v622, %v622
  %v719 = vmul.f32 %v623, %v623
  %v720 = vmul.f32 %v624, %v624
  %v721 = vmul.f32 %v625, %v625
  %v722 = vmul.f32 %v626, %v626
  %v723 = vmul.f32 %v627, %v627
  %v724 = vmul.f32 %v628, %v628
  %v725 = vmul.f32 %v629, %v629
  %v726 = vmul.f32 %v630, %v630
  %v727 = vmul.f32 %v631, %v631
  %v728 = vmul.f32 %v632, %v632
  %v729 = vmul.f32 %v633, %v633
  %730 = vadd.xlane.f32.xlu0 %v698
  %v731 = vpop.xlane.xlu0 %730
  %732 = vadd.xlane.f32.xlu0 %v699
  %v733 = vpop.xlane.xlu0 %732
  %734 = vadd.xlane.f32.xlu0 %v700
  %v735 = vpop.xlane.xlu0 %734
  %736 = vadd.xlane.f32.xlu0 %v701
  %v737 = vpop.xlane.xlu0 %736
  %738 = vadd.xlane.f32.xlu0 %v702
  %v739 = vpop.xlane.xlu0 %738
  %740 = vadd.xlane.f32.xlu0 %v703
  %v741 = vpop.xlane.xlu0 %740
  %742 = vadd.xlane.f32.xlu0 %v704
  %v743 = vpop.xlane.xlu0 %742
  %744 = vadd.xlane.f32.xlu0 %v705
  %v745 = vpop.xlane.xlu0 %744
  %746 = vadd.xlane.f32.xlu0 %v706
  %v747 = vpop.xlane.xlu0 %746
  %748 = vadd.xlane.f32.xlu0 %v707
  %v749 = vpop.xlane.xlu0 %748
  %750 = vadd.xlane.f32.xlu0 %v708
  %v751 = vpop.xlane.xlu0 %750
  %752 = vadd.xlane.f32.xlu0 %v709
  %v753 = vpop.xlane.xlu0 %752
  %754 = vadd.xlane.f32.xlu0 %v710
  %v755 = vpop.xlane.xlu0 %754
  %756 = vadd.xlane.f32.xlu0 %v711
  %v757 = vpop.xlane.xlu0 %756
  %758 = vadd.xlane.f32.xlu0 %v712
  %v759 = vpop.xlane.xlu0 %758
  %760 = vadd.xlane.f32.xlu0 %v713
  %v761 = vpop.xlane.xlu0 %760
  %762 = vadd.xlane.f32.xlu0 %v714
  %v763 = vpop.xlane.xlu0 %762
  %764 = vadd.xlane.f32.xlu0 %v715
  %v765 = vpop.xlane.xlu0 %764
  %766 = vadd.xlane.f32.xlu0 %v716
  %v767 = vpop.xlane.xlu0 %766
  %768 = vadd.xlane.f32.xlu0 %v717
  %v769 = vpop.xlane.xlu0 %768
  %770 = vadd.xlane.f32.xlu0 %v718
  %v771 = vpop.xlane.xlu0 %770
  %772 = vadd.xlane.f32.xlu0 %v719
  %v773 = vpop.xlane.xlu0 %772
  %774 = vadd.xlane.f32.xlu0 %v720
  %v775 = vpop.xlane.xlu0 %774
  %776 = vadd.xlane.f32.xlu0 %v721
  %v777 = vpop.xlane.xlu0 %776
  %778 = vadd.xlane.f32.xlu0 %v722
  %v779 = vpop.xlane.xlu0 %778
  %780 = vadd.xlane.f32.xlu0 %v723
  %v781 = vpop.xlane.xlu0 %780
  %782 = vadd.xlane.f32.xlu0 %v724
  %v783 = vpop.xlane.xlu0 %782
  %784 = vadd.xlane.f32.xlu0 %v725
  %v785 = vpop.xlane.xlu0 %784
  %786 = vadd.xlane.f32.xlu0 %v726
  %v787 = vpop.xlane.xlu0 %786
  %788 = vadd.xlane.f32.xlu0 %v727
  %v789 = vpop.xlane.xlu0 %788
  %790 = vadd.xlane.f32.xlu0 %v728
  %v791 = vpop.xlane.xlu0 %790
  %792 = vadd.xlane.f32.xlu0 %v729
  %v793 = vpop.xlane.xlu0 %792
  %p794 = scmp.eq.s32.totalorder 0, 0
  // Predicated region
  $region14: #{mlp_forward.2} parent=0 // pred_check
    %p795 = pneg %p794
  $region15: #{mlp_forward.2} parent=0 // pred_check_branch
    %797 = sbr.rel (%p795) target = $region17
  $region16: #{mlp_forward.2} parent=0 // pred_region
    %vm798 = vcmask 7168
    %799 = vst.msk [vmem:[%s3] sm:$0xff] %vm798, 0.0
    %800 = vst.msk [vmem:[%s3 + $0x8] sm:$0xff] %vm798, 0.0
    %801 = vst.msk [vmem:[%s3 + $0x10] sm:$0xff] %vm798, 0.0
    %802 = vst.msk [vmem:[%s3 + $0x18] sm:$0xff] %vm798, 0.0
    %803 = vst.msk [vmem:[%s3 + $0x20] sm:$0xff] %vm798, 0.0
    %804 = vst.msk [vmem:[%s3 + $0x28] sm:$0xff] %vm798, 0.0
    %805 = vst.msk [vmem:[%s3 + $0x30] sm:$0xff] %vm798, 0.0
    %806 = vst.msk [vmem:[%s3 + $0x38] sm:$0xff] %vm798, 0.0
    %807 = vst.msk [vmem:[%s3 + $0x40] sm:$0xff] %vm798, 0.0
    %808 = vst.msk [vmem:[%s3 + $0x48] sm:$0xff] %vm798, 0.0
    %809 = vst.msk [vmem:[%s3 + $0x50] sm:$0xff] %vm798, 0.0
    %810 = vst.msk [vmem:[%s3 + $0x58] sm:$0xff] %vm798, 0.0
    %811 = vst.msk [vmem:[%s3 + $0x60] sm:$0xff] %vm798, 0.0
    %812 = vst.msk [vmem:[%s3 + $0x68] sm:$0xff] %vm798, 0.0
    %813 = vst.msk [vmem:[%s3 + $0x70] sm:$0xff] %vm798, 0.0
    %814 = vst.msk [vmem:[%s3 + $0x78] sm:$0xff] %vm798, 0.0
    %815 = vst.msk [vmem:[%s3 + $0x80] sm:$0xff] %vm798, 0.0
    %816 = vst.msk [vmem:[%s3 + $0x88] sm:$0xff] %vm798, 0.0
    %817 = vst.msk [vmem:[%s3 + $0x90] sm:$0xff] %vm798, 0.0
    %818 = vst.msk [vmem:[%s3 + $0x98] sm:$0xff] %vm798, 0.0
    %819 = vst.msk [vmem:[%s3 + $0xa0] sm:$0xff] %vm798, 0.0
    %820 = vst.msk [vmem:[%s3 + $0xa8] sm:$0xff] %vm798, 0.0
    %821 = vst.msk [vmem:[%s3 + $0xb0] sm:$0xff] %vm798, 0.0
    %822 = vst.msk [vmem:[%s3 + $0xb8] sm:$0xff] %vm798, 0.0
    %823 = vst.msk [vmem:[%s3 + $0xc0] sm:$0xff] %vm798, 0.0
    %824 = vst.msk [vmem:[%s3 + $0xc8] sm:$0xff] %vm798, 0.0
    %825 = vst.msk [vmem:[%s3 + $0xd0] sm:$0xff] %vm798, 0.0
    %826 = vst.msk [vmem:[%s3 + $0xd8] sm:$0xff] %vm798, 0.0
    %827 = vst.msk [vmem:[%s3 + $0xe0] sm:$0xff] %vm798, 0.0
    %828 = vst.msk [vmem:[%s3 + $0xe8] sm:$0xff] %vm798, 0.0
    %829 = vst.msk [vmem:[%s3 + $0xf0] sm:$0xff] %vm798, 0.0
    %830 = vst.msk [vmem:[%s3 + $0xf8] sm:$0xff] %vm798, 0.0
    %831 = vst.msk [vmem:[%s4] sm:$0xff] %vm798, 0.0
    %832 = vst.msk [vmem:[%s4 + $0x8] sm:$0xff] %vm798, 0.0
    %833 = vst.msk [vmem:[%s4 + $0x10] sm:$0xff] %vm798, 0.0
    %834 = vst.msk [vmem:[%s4 + $0x18] sm:$0xff] %vm798, 0.0
    %835 = vst.msk [vmem:[%s4 + $0x20] sm:$0xff] %vm798, 0.0
    %836 = vst.msk [vmem:[%s4 + $0x28] sm:$0xff] %vm798, 0.0
    %837 = vst.msk [vmem:[%s4 + $0x30] sm:$0xff] %vm798, 0.0
    %838 = vst.msk [vmem:[%s4 + $0x38] sm:$0xff] %vm798, 0.0
    %839 = vst.msk [vmem:[%s4 + $0x40] sm:$0xff] %vm798, 0.0
    %840 = vst.msk [vmem:[%s4 + $0x48] sm:$0xff] %vm798, 0.0
    %841 = vst.msk [vmem:[%s4 + $0x50] sm:$0xff] %vm798, 0.0
    %842 = vst.msk [vmem:[%s4 + $0x58] sm:$0xff] %vm798, 0.0
    %843 = vst.msk [vmem:[%s4 + $0x60] sm:$0xff] %vm798, 0.0
    %844 = vst.msk [vmem:[%s4 + $0x68] sm:$0xff] %vm798, 0.0
    %845 = vst.msk [vmem:[%s4 + $0x70] sm:$0xff] %vm798, 0.0
    %846 = vst.msk [vmem:[%s4 + $0x78] sm:$0xff] %vm798, 0.0
    %847 = vst.msk [vmem:[%s4 + $0x80] sm:$0xff] %vm798, 0.0
    %848 = vst.msk [vmem:[%s4 + $0x88] sm:$0xff] %vm798, 0.0
    %849 = vst.msk [vmem:[%s4 + $0x90] sm:$0xff] %vm798, 0.0
    %850 = vst.msk [vmem:[%s4 + $0x98] sm:$0xff] %vm798, 0.0
    %851 = vst.msk [vmem:[%s4 + $0xa0] sm:$0xff] %vm798, 0.0
    %852 = vst.msk [vmem:[%s4 + $0xa8] sm:$0xff] %vm798, 0.0
    %853 = vst.msk [vmem:[%s4 + $0xb0] sm:$0xff] %vm798, 0.0
    %854 = vst.msk [vmem:[%s4 + $0xb8] sm:$0xff] %vm798, 0.0
    %855 = vst.msk [vmem:[%s4 + $0xc0] sm:$0xff] %vm798, 0.0
    %856 = vst.msk [vmem:[%s4 + $0xc8] sm:$0xff] %vm798, 0.0
    %857 = vst.msk [vmem:[%s4 + $0xd0] sm:$0xff] %vm798, 0.0
    %858 = vst.msk [vmem:[%s4 + $0xd8] sm:$0xff] %vm798, 0.0
    %859 = vst.msk [vmem:[%s4 + $0xe0] sm:$0xff] %vm798, 0.0
    %860 = vst.msk [vmem:[%s4 + $0xe8] sm:$0xff] %vm798, 0.0
    %861 = vst.msk [vmem:[%s4 + $0xf0] sm:$0xff] %vm798, 0.0
    %862 = vst.msk [vmem:[%s4 + $0xf8] sm:$0xff] %vm798, 0.0
  $region17: #{mlp_forward.2} parent=0 // pred_fallthru
    _
  %v863 = vld [vmem:[%s3] sm:$0xff]
  %v864 = vld [vmem:[%s3 + $0x8] sm:$0xff]
  %v865 = vld [vmem:[%s3 + $0x10] sm:$0xff]
  %v866 = vld [vmem:[%s3 + $0x18] sm:$0xff]
  %v867 = vld [vmem:[%s3 + $0x20] sm:$0xff]
  %v868 = vld [vmem:[%s3 + $0x28] sm:$0xff]
  %v869 = vld [vmem:[%s3 + $0x30] sm:$0xff]
  %v870 = vld [vmem:[%s3 + $0x38] sm:$0xff]
  %v871 = vld [vmem:[%s3 + $0x40] sm:$0xff]
  %v872 = vld [vmem:[%s3 + $0x48] sm:$0xff]
  %v873 = vld [vmem:[%s3 + $0x50] sm:$0xff]
  %v874 = vld [vmem:[%s3 + $0x58] sm:$0xff]
  %v875 = vld [vmem:[%s3 + $0x60] sm:$0xff]
  %v876 = vld [vmem:[%s3 + $0x68] sm:$0xff]
  %v877 = vld [vmem:[%s3 + $0x70] sm:$0xff]
  %v878 = vld [vmem:[%s3 + $0x78] sm:$0xff]
  %v879 = vld [vmem:[%s3 + $0x80] sm:$0xff]
  %v880 = vld [vmem:[%s3 + $0x88] sm:$0xff]
  %v881 = vld [vmem:[%s3 + $0x90] sm:$0xff]
  %v882 = vld [vmem:[%s3 + $0x98] sm:$0xff]
  %v883 = vld [vmem:[%s3 + $0xa0] sm:$0xff]
  %v884 = vld [vmem:[%s3 + $0xa8] sm:$0xff]
  %v885 = vld [vmem:[%s3 + $0xb0] sm:$0xff]
  %v886 = vld [vmem:[%s3 + $0xb8] sm:$0xff]
  %v887 = vld [vmem:[%s3 + $0xc0] sm:$0xff]
  %v888 = vld [vmem:[%s3 + $0xc8] sm:$0xff]
  %v889 = vld [vmem:[%s3 + $0xd0] sm:$0xff]
  %v890 = vld [vmem:[%s3 + $0xd8] sm:$0xff]
  %v891 = vld [vmem:[%s3 + $0xe0] sm:$0xff]
  %v892 = vld [vmem:[%s3 + $0xe8] sm:$0xff]
  %v893 = vld [vmem:[%s3 + $0xf0] sm:$0xff]
  %v894 = vld [vmem:[%s3 + $0xf8] sm:$0xff]
  %v895 = vadd.f32 %v863, %v635
  %v896 = vadd.f32 %v864, %v637
  %v897 = vadd.f32 %v865, %v639
  %v898 = vadd.f32 %v866, %v641
  %v899 = vadd.f32 %v867, %v643
  %v900 = vadd.f32 %v868, %v645
  %v901 = vadd.f32 %v869, %v647
  %v902 = vadd.f32 %v870, %v649
  %v903 = vadd.f32 %v871, %v651
  %v904 = vadd.f32 %v872, %v653
  %v905 = vadd.f32 %v873, %v655
  %v906 = vadd.f32 %v874, %v657
  %v907 = vadd.f32 %v875, %v659
  %v908 = vadd.f32 %v876, %v661
  %v909 = vadd.f32 %v877, %v663
  %v910 = vadd.f32 %v878, %v665
  %v911 = vadd.f32 %v879, %v667
  %v912 = vadd.f32 %v880, %v669
  %v913 = vadd.f32 %v881, %v671
  %v914 = vadd.f32 %v882, %v673
  %v915 = vadd.f32 %v883, %v675
  %v916 = vadd.f32 %v884, %v677
  %v917 = vadd.f32 %v885, %v679
  %v918 = vadd.f32 %v886, %v681
  %v919 = vadd.f32 %v887, %v683
  %v920 = vadd.f32 %v888, %v685
  %v921 = vadd.f32 %v889, %v687
  %v922 = vadd.f32 %v890, %v689
  %v923 = vadd.f32 %v891, %v691
  %v924 = vadd.f32 %v892, %v693
  %v925 = vadd.f32 %v893, %v695
  %v926 = vadd.f32 %v894, %v697
  %vm927 = vcmask 7168
  %928 = vst.msk [vmem:[%s3] sm:$0xff] %vm927, %v895
  %929 = vst.msk [vmem:[%s3 + $0x8] sm:$0xff] %vm927, %v896
  %930 = vst.msk [vmem:[%s3 + $0x10] sm:$0xff] %vm927, %v897
  %931 = vst.msk [vmem:[%s3 + $0x18] sm:$0xff] %vm927, %v898
  %932 = vst.msk [vmem:[%s3 + $0x20] sm:$0xff] %vm927, %v899
  %933 = vst.msk [vmem:[%s3 + $0x28] sm:$0xff] %vm927, %v900
  %934 = vst.msk [vmem:[%s3 + $0x30] sm:$0xff] %vm927, %v901
  %935 = vst.msk [vmem:[%s3 + $0x38] sm:$0xff] %vm927, %v902
  %936 = vst.msk [vmem:[%s3 + $0x40] sm:$0xff] %vm927, %v903
  %937 = vst.msk [vmem:[%s3 + $0x48] sm:$0xff] %vm927, %v904
  %938 = vst.msk [vmem:[%s3 + $0x50] sm:$0xff] %vm927, %v905
  %939 = vst.msk [vmem:[%s3 + $0x58] sm:$0xff] %vm927, %v906
  %940 = vst.msk [vmem:[%s3 + $0x60] sm:$0xff] %vm927, %v907
  %941 = vst.msk [vmem:[%s3 + $0x68] sm:$0xff] %vm927, %v908
  %942 = vst.msk [vmem:[%s3 + $0x70] sm:$0xff] %vm927, %v909
  %943 = vst.msk [vmem:[%s3 + $0x78] sm:$0xff] %vm927, %v910
  %944 = vst.msk [vmem:[%s3 + $0x80] sm:$0xff] %vm927, %v911
  %945 = vst.msk [vmem:[%s3 + $0x88] sm:$0xff] %vm927, %v912
  %946 = vst.msk [vmem:[%s3 + $0x90] sm:$0xff] %vm927, %v913
  %947 = vst.msk [vmem:[%s3 + $0x98] sm:$0xff] %vm927, %v914
  %948 = vst.msk [vmem:[%s3 + $0xa0] sm:$0xff] %vm927, %v915
  %949 = vst.msk [vmem:[%s3 + $0xa8] sm:$0xff] %vm927, %v916
  %950 = vst.msk [vmem:[%s3 + $0xb0] sm:$0xff] %vm927, %v917
  %951 = vst.msk [vmem:[%s3 + $0xb8] sm:$0xff] %vm927, %v918
  %952 = vst.msk [vmem:[%s3 + $0xc0] sm:$0xff] %vm927, %v919
  %953 = vst.msk [vmem:[%s3 + $0xc8] sm:$0xff] %vm927, %v920
  %954 = vst.msk [vmem:[%s3 + $0xd0] sm:$0xff] %vm927, %v921
  %955 = vst.msk [vmem:[%s3 + $0xd8] sm:$0xff] %vm927, %v922
  %956 = vst.msk [vmem:[%s3 + $0xe0] sm:$0xff] %vm927, %v923
  %957 = vst.msk [vmem:[%s3 + $0xe8] sm:$0xff] %vm927, %v924
  %958 = vst.msk [vmem:[%s3 + $0xf0] sm:$0xff] %vm927, %v925
  %959 = vst.msk [vmem:[%s3 + $0xf8] sm:$0xff] %vm927, %v926
  %v960 = vld [vmem:[%s4] sm:$0xff]
  %v961 = vld [vmem:[%s4 + $0x8] sm:$0xff]
  %v962 = vld [vmem:[%s4 + $0x10] sm:$0xff]
  %v963 = vld [vmem:[%s4 + $0x18] sm:$0xff]
  %v964 = vld [vmem:[%s4 + $0x20] sm:$0xff]
  %v965 = vld [vmem:[%s4 + $0x28] sm:$0xff]
  %v966 = vld [vmem:[%s4 + $0x30] sm:$0xff]
  %v967 = vld [vmem:[%s4 + $0x38] sm:$0xff]
  %v968 = vld [vmem:[%s4 + $0x40] sm:$0xff]
  %v969 = vld [vmem:[%s4 + $0x48] sm:$0xff]
  %v970 = vld [vmem:[%s4 + $0x50] sm:$0xff]
  %v971 = vld [vmem:[%s4 + $0x58] sm:$0xff]
  %v972 = vld [vmem:[%s4 + $0x60] sm:$0xff]
  %v973 = vld [vmem:[%s4 + $0x68] sm:$0xff]
  %v974 = vld [vmem:[%s4 + $0x70] sm:$0xff]
  %v975 = vld [vmem:[%s4 + $0x78] sm:$0xff]
  %v976 = vld [vmem:[%s4 + $0x80] sm:$0xff]
  %v977 = vld [vmem:[%s4 + $0x88] sm:$0xff]
  %v978 = vld [vmem:[%s4 + $0x90] sm:$0xff]
  %v979 = vld [vmem:[%s4 + $0x98] sm:$0xff]
  %v980 = vld [vmem:[%s4 + $0xa0] sm:$0xff]
  %v981 = vld [vmem:[%s4 + $0xa8] sm:$0xff]
  %v982 = vld [vmem:[%s4 + $0xb0] sm:$0xff]
  %v983 = vld [vmem:[%s4 + $0xb8] sm:$0xff]
  %v984 = vld [vmem:[%s4 + $0xc0] sm:$0xff]
  %v985 = vld [vmem:[%s4 + $0xc8] sm:$0xff]
  %v986 = vld [vmem:[%s4 + $0xd0] sm:$0xff]
  %v987 = vld [vmem:[%s4 + $0xd8] sm:$0xff]
  %v988 = vld [vmem:[%s4 + $0xe0] sm:$0xff]
  %v989 = vld [vmem:[%s4 + $0xe8] sm:$0xff]
  %v990 = vld [vmem:[%s4 + $0xf0] sm:$0xff]
  %v991 = vld [vmem:[%s4 + $0xf8] sm:$0xff]
  %v992 = vadd.f32 %v960, %v731
  %v993 = vadd.f32 %v961, %v733
  %v994 = vadd.f32 %v962, %v735
  %v995 = vadd.f32 %v963, %v737
  %v996 = vadd.f32 %v964, %v739
  %v997 = vadd.f32 %v965, %v741
  %v998 = vadd.f32 %v966, %v743
  %v999 = vadd.f32 %v967, %v745
  %v1000 = vadd.f32 %v968, %v747
  %v1001 = vadd.f32 %v969, %v749
  %v1002 = vadd.f32 %v970, %v751
  %v1003 = vadd.f32 %v971, %v753
  %v1004 = vadd.f32 %v972, %v755
  %v1005 = vadd.f32 %v973, %v757
  %v1006 = vadd.f32 %v974, %v759
  %v1007 = vadd.f32 %v975, %v761
  %v1008 = vadd.f32 %v976, %v763
  %v1009 = vadd.f32 %v977, %v765
  %v1010 = vadd.f32 %v978, %v767
  %v1011 = vadd.f32 %v979, %v769
  %v1012 = vadd.f32 %v980, %v771
  %v1013 = vadd.f32 %v981, %v773
  %v1014 = vadd.f32 %v982, %v775
  %v1015 = vadd.f32 %v983, %v777
  %v1016 = vadd.f32 %v984, %v779
  %v1017 = vadd.f32 %v985, %v781
  %v1018 = vadd.f32 %v986, %v783
  %v1019 = vadd.f32 %v987, %v785
  %v1020 = vadd.f32 %v988, %v787
  %v1021 = vadd.f32 %v989, %v789
  %v1022 = vadd.f32 %v990, %v791
  %v1023 = vadd.f32 %v991, %v793
  %1024 = vst.msk [vmem:[%s4] sm:$0xff] %vm927, %v992
  %1025 = vst.msk [vmem:[%s4 + $0x8] sm:$0xff] %vm927, %v993
  %1026 = vst.msk [vmem:[%s4 + $0x10] sm:$0xff] %vm927, %v994
  %1027 = vst.msk [vmem:[%s4 + $0x18] sm:$0xff] %vm927, %v995
  %1028 = vst.msk [vmem:[%s4 + $0x20] sm:$0xff] %vm927, %v996
  %1029 = vst.msk [vmem:[%s4 + $0x28] sm:$0xff] %vm927, %v997
  %1030 = vst.msk [vmem:[%s4 + $0x30] sm:$0xff] %vm927, %v998
  %1031 = vst.msk [vmem:[%s4 + $0x38] sm:$0xff] %vm927, %v999
  %1032 = vst.msk [vmem:[%s4 + $0x40] sm:$0xff] %vm927, %v1000
  %1033 = vst.msk [vmem:[%s4 + $0x48] sm:$0xff] %vm927, %v1001
  %1034 = vst.msk [vmem:[%s4 + $0x50] sm:$0xff] %vm927, %v1002
  %1035 = vst.msk [vmem:[%s4 + $0x58] sm:$0xff] %vm927, %v1003
  %1036 = vst.msk [vmem:[%s4 + $0x60] sm:$0xff] %vm927, %v1004
  %1037 = vst.msk [vmem:[%s4 + $0x68] sm:$0xff] %vm927, %v1005
  %1038 = vst.msk [vmem:[%s4 + $0x70] sm:$0xff] %vm927, %v1006
  %1039 = vst.msk [vmem:[%s4 + $0x78] sm:$0xff] %vm927, %v1007
  %1040 = vst.msk [vmem:[%s4 + $0x80] sm:$0xff] %vm927, %v1008
  %1041 = vst.msk [vmem:[%s4 + $0x88] sm:$0xff] %vm927, %v1009
  %1042 = vst.msk [vmem:[%s4 + $0x90] sm:$0xff] %vm927, %v1010
  %1043 = vst.msk [vmem:[%s4 + $0x98] sm:$0xff] %vm927, %v1011
  %1044 = vst.msk [vmem:[%s4 + $0xa0] sm:$0xff] %vm927, %v1012
  %1045 = vst.msk [vmem:[%s4 + $0xa8] sm:$0xff] %vm927, %v1013
  %1046 = vst.msk [vmem:[%s4 + $0xb0] sm:$0xff] %vm927, %v1014
  %1047 = vst.msk [vmem:[%s4 + $0xb8] sm:$0xff] %vm927, %v1015
  %1048 = vst.msk [vmem:[%s4 + $0xc0] sm:$0xff] %vm927, %v1016
  %1049 = vst.msk [vmem:[%s4 + $0xc8] sm:$0xff] %vm927, %v1017
  %1050 = vst.msk [vmem:[%s4 + $0xd0] sm:$0xff] %vm927, %v1018
  %1051 = vst.msk [vmem:[%s4 + $0xd8] sm:$0xff] %vm927, %v1019
  %1052 = vst.msk [vmem:[%s4 + $0xe0] sm:$0xff] %vm927, %v1020
  %1053 = vst.msk [vmem:[%s4 + $0xe8] sm:$0xff] %vm927, %v1021
  %1054 = vst.msk [vmem:[%s4 + $0xf0] sm:$0xff] %vm927, %v1022
  %1055 = vst.msk [vmem:[%s4 + $0xf8] sm:$0xff] %vm927, %v1023
  // Predicated region
  $region18: #{mlp_forward.2} parent=0 // pred_check
    _
  $region19: #{mlp_forward.2} parent=0 // pred_check_branch
    %1057 = sbr.rel (0) target = $region21
  $region20: #{mlp_forward.2} parent=0 // pred_region
    _
  $region21: #{mlp_forward.2} parent=0 // pred_fallthru
    _
  // Predicated region
  $region22: #{mlp_forward.2} parent=0 // pred_check
    _
  $region23: #{mlp_forward.2} parent=0 // pred_check_branch
    %1059 = sbr.rel (0) target = $region25
  $region24: #{mlp_forward.2} parent=0 // pred_region
    _
  $region25: #{mlp_forward.2} parent=0 // pred_fallthru
    _
  // Predicated region
  $region26: #{mlp_forward.2} parent=0 // pred_check
    _
  $region27: #{mlp_forward.2} parent=0 // pred_check_branch
    %1061 = sbr.rel (0) target = $region29
  $region28: #{mlp_forward.2} parent=0 // pred_region
    _
  $region29: #{mlp_forward.2} parent=0 // pred_fallthru
    _
  // Predicated region
  $region30: #{mlp_forward.2} parent=0 // pred_check
    _
  $region31: #{mlp_forward.2} parent=0 // pred_check_branch
    %1063 = sbr.rel (0) target = $region33
  $region32: #{mlp_forward.2} parent=0 // pred_region
    _
  $region33: #{mlp_forward.2} parent=0 // pred_fallthru
    _

</llo_original>
